<compile_context>
chip_gen: v7x
topology: tpu7x:2x2x1
jax: 0.10.0
libtpu: 0.0.40
codegen_flags: <defaults>
</compile_context>

<pallas_src>
import math

import jax
import jax.numpy as jnp
from jax.experimental import pallas as pl
from jax.experimental.pallas import tpu as pltpu


def _round_up(x, m):
    return ((x + m - 1) // m) * m


def _cdiv(a, b):
    return -(-a // b)


# --------------------------------------------------------------------------
# Kernel 1: 1-D conv (stride 1, dilation 1, 'same' padding done outside),
# fused with per-channel affine (bias and/or eval BatchNorm) + ReLU, and an
# optional second affine + ReLU (used to fuse the first layer's BatchNorm).
# Layout: (T, B, C); grid over T tiles; halo rows arrive as a second operand.
# --------------------------------------------------------------------------
def _conv_bn_relu_kernel(x_ref, xh_ref, w_ref, s1_ref, b1_ref, s2_ref, b2_ref,
                         o_ref, win_ref):
    # x_ref : (Tt, B, C) bf16       current tile of the zero-padded input
    # xh_ref: (K-1, B, C) bf16      halo rows just past the tile
    # w_ref : (K, C, C) bf16        w_ref[k][ci, co] == torch_weight[co, ci, k]
    # s*/b* : (1, 1, C) f32         fused affine(s)
    # o_ref : (Tt, B, C) f32
    # win_ref: (Tt + K - 1, B, C) bf16 scratch window
    K = w_ref.shape[0]
    Tt = x_ref.shape[0]

    # Assemble the halo'ed window once; tap slices below shift the *leading*
    # axis only (pure address offsets, no sublane relayout).
    win_ref[0:Tt] = x_ref[...]
    win_ref[Tt:Tt + K - 1] = xh_ref[...]

    acc = jnp.zeros(o_ref.shape, jnp.float32)
    for k in range(K):                                  # static tap loop (K small)
        xs = win_ref[k:k + Tt]                          # (Tt, B, C) bf16
        acc = acc + jax.lax.dot_general(
            xs, w_ref[k],
            dimension_numbers=(((2,), (0,)), ((), ())),
            preferred_element_type=jnp.float32)

    y = jnp.maximum(acc * s1_ref[...] + b1_ref[...], 0.0)
    y = jnp.maximum(y * s2_ref[...] + b2_ref[...], 0.0)  # identity when s2=1,b2=0
    o_ref[...] = y.astype(o_ref.dtype)


def conv_bn_relu(h_tbc, w_kcc_bf16, scale1, shift1, scale2, shift2, *, t_tile=128):
    """h_tbc: (T, B, C) f32.  Returns (T, B, C) f32."""
    T, B, C = h_tbc.shape
    K = w_kcc_bf16.shape[0]
    assert K >= 3 and K % 2 == 1, "expects odd kernel_size >= 3"
    halo = K - 1
    P = halo // 2

    # t_tile must be a multiple of 8 (layout) and of K-1 (halo index_map).
    unit = (8 * halo) // math.gcd(8, halo)
    t_tile = max(unit, min(_round_up(t_tile, unit), _round_up(T, unit)))
    n_t = _cdiv(T, t_tile)
    T_r = n_t * t_tile

    # Zero pad: P rows in front (conv 'same' padding), (T_r - T + P) behind
    # (padding + rounding to a whole number of tiles).  bf16 for the MXU/DMA.
    xp = jnp.pad(h_tbc, ((P, T_r - T + P), (0, 0), (0, 0))).astype(jnp.bfloat16)

    grid_spec = pltpu.PrefetchScalarGridSpec(
        num_scalar_prefetch=0,
        grid=(n_t,),
        in_specs=[
            pl.BlockSpec((t_tile, B, C), lambda j: (j, 0, 0)),
            # K-1 halo rows starting right after the tile: element offset
            # (j+1)*t_tile == block index (j+1)*t_tile//halo with block size halo.
            pl.BlockSpec((halo, B, C), lambda j: ((j + 1) * (t_tile // halo), 0, 0)),
            pl.BlockSpec((K, C, C), lambda j: (0, 0, 0)),       # resident weights
            pl.BlockSpec((1, 1, C), lambda j: (0, 0, 0)),
            pl.BlockSpec((1, 1, C), lambda j: (0, 0, 0)),
            pl.BlockSpec((1, 1, C), lambda j: (0, 0, 0)),
            pl.BlockSpec((1, 1, C), lambda j: (0, 0, 0)),
        ],
        out_specs=pl.BlockSpec((t_tile, B, C), lambda j: (j, 0, 0)),
        scratch_shapes=[pltpu.VMEM((t_tile + halo, B, C), jnp.bfloat16)],
    )
    out = pl.pallas_call(
        _conv_bn_relu_kernel,
        out_shape=jax.ShapeDtypeStruct((T_r, B, C), jnp.float32),
        grid_spec=grid_spec,
        compiler_params=pltpu.CompilerParams(
            dimension_semantics=("parallel",),          # independent T tiles
            vmem_limit_bytes=64 * 1024 * 1024),
    )(xp, xp, w_kcc_bf16, scale1, shift1, scale2, shift2)
    return out[:T]


# --------------------------------------------------------------------------
# Kernel 2: length-masked bidirectional LSTM, gridded over T chunks.
# Per chunk: one big MXU matmul projects the whole chunk for both directions
# (input projection hoisted out of the time loop); the per-timestep loop only
# carries the small h@Whh recurrences, with fwd/bwd interleaved.
# Outputs are zeroed for t >= length[b], matching pack/pad_packed_sequence.
# --------------------------------------------------------------------------
def _bilstm_chunk_kernel(lens_ref, xf_ref, xb_ref,
                         wih_f_ref, whh_f_ref, bf_ref,
                         wih_b_ref, whh_b_ref, bb_ref,
                         of_ref, ob_ref,
                         gf_s, gb_s, hf, cf, hb, cb):
    # lens_ref: (B, 1) int32
    # xf_ref:   (Tc, B, C) bf16  chunk j            (forward direction)
    # xb_ref:   (Tc, B, C) bf16  chunk n_chunks-1-j (backward direction)
    # wih_*:    (C, 4H) bf16, whh_*: (H, 4H) f32, b*: (1, 1, 4H) f32
    # of_ref:   (Tc, B, H) f32 block of chunk j
    # ob_ref:   (Tc, B, H) f32 block of chunk n_chunks-1-j
    j = pl.program_id(0)
    n_chunks = pl.num_programs(0)
    Tc = xf_ref.shape[0]
    H = whh_f_ref.shape[0]

    @pl.when(j == 0)
    def _():
        hf[...] = jnp.zeros_like(hf)
        cf[...] = jnp.zeros_like(cf)
        hb[...] = jnp.zeros_like(hb)
        cb[...] = jnp.zeros_like(cb)

    dn = (((2,), (0,)), ((), ()))
    # Chunk-level input projections for both directions: one big MXU matmul
    # each, bf16 operands, f32 accumulation; bias folded in here.
    gf_s[...] = jax.lax.dot_general(xf_ref[...], wih_f_ref[...], dn,
                                    preferred_element_type=jnp.float32) + bf_ref[...]
    gb_s[...] = jax.lax.dot_general(xb_ref[...], wih_b_ref[...], dn,
                                    preferred_element_type=jnp.float32) + bb_ref[...]

    lens = lens_ref[...]                               # (B, 1)
    whh_f = whh_f_ref[...]
    whh_b = whh_b_ref[...]

    def gates(pre, h, whh):
        g = pre + jnp.dot(h, whh, preferred_element_type=jnp.float32)
        i = jax.nn.sigmoid(g[:, 0 * H:1 * H])          # PyTorch gate order i,f,g,o
        f = jax.nn.sigmoid(g[:, 1 * H:2 * H])
        gg = jnp.tanh(g[:, 2 * H:3 * H])
        o = jax.nn.sigmoid(g[:, 3 * H:4 * H])
        return i, f, gg, o

    def step(i_loc, carry):
        # ---- forward direction, global time t = j*Tc + i_loc
        t_f = j * Tc + i_loc
        ig, fg, gg, og = gates(gf_s[i_loc], hf[...], whh_f)
        c_new = fg * cf[...] + ig * gg
        h_new = og * jnp.tanh(c_new)
        m_f = t_f < lens                               # (B, 1) mask
        hf[...] = jnp.where(m_f, h_new, hf[...])
        cf[...] = jnp.where(m_f, c_new, cf[...])
        of_ref[i_loc] = jnp.where(m_f, h_new, 0.0).astype(of_ref.dtype)

        # ---- backward direction (interleaved), descending within its chunk
        i_rev = Tc - 1 - i_loc
        t_b = (n_chunks - 1 - j) * Tc + i_rev
        igb, fgb, ggb, ogb = gates(gb_s[i_rev], hb[...], whh_b)
        cb_new = fgb * cb[...] + igb * ggb
        hb_new = ogb * jnp.tanh(cb_new)
        m_b = t_b < lens                               # state stays 0 until t = len-1
        hb[...] = jnp.where(m_b, hb_new, hb[...])
        cb[...] = jnp.where(m_b, cb_new, cb[...])
        ob_ref[i_rev] = jnp.where(m_b, hb_new, 0.0).astype(ob_ref.dtype)
        return carry

    jax.lax.fori_loop(0, Tc, step, 0)


def bilstm(x_tbc, lens_b1, wih_f, whh_f, b_f, wih_b, whh_b, b_b, *, t_tile=64):
    """x_tbc: (T, B, C) f32.  Returns out_f, out_b each (T_r, B, H) f32."""
    T, B, C = x_tbc.shape
    H = whh_f.shape[0]
    t_tile = max(8, min(_round_up(t_tile, 8), _round_up(T, 8)))
    n_t = _cdiv(T, t_tile)
    T_r = n_t * t_tile

    x = jnp.pad(x_tbc, ((0, T_r - T), (0, 0), (0, 0))).astype(jnp.bfloat16)

    grid_spec = pltpu.PrefetchScalarGridSpec(
        num_scalar_prefetch=0,
        grid=(n_t,),
        in_specs=[
            pl.BlockSpec((B, 1), lambda j: (0, 0)),                        # lengths
            pl.BlockSpec((t_tile, B, C), lambda j: (j, 0, 0)),             # fwd chunk
            pl.BlockSpec((t_tile, B, C), lambda j: (n_t - 1 - j, 0, 0)),   # bwd chunk
            pl.BlockSpec((C, 4 * H), lambda j: (0, 0)),
            pl.BlockSpec((H, 4 * H), lambda j: (0, 0)),
            pl.BlockSpec((1, 1, 4 * H), lambda j: (0, 0, 0)),
            pl.BlockSpec((C, 4 * H), lambda j: (0, 0)),
            pl.BlockSpec((H, 4 * H), lambda j: (0, 0)),
            pl.BlockSpec((1, 1, 4 * H), lambda j: (0, 0, 0)),
        ],
        out_specs=(
            pl.BlockSpec((t_tile, B, H), lambda j: (j, 0, 0)),
            pl.BlockSpec((t_tile, B, H), lambda j: (n_t - 1 - j, 0, 0)),
        ),
        scratch_shapes=[
            pltpu.VMEM((t_tile, B, 4 * H), jnp.float32),   # fwd gate pre-activations
            pltpu.VMEM((t_tile, B, 4 * H), jnp.float32),   # bwd gate pre-activations
            pltpu.VMEM((B, H), jnp.float32),               # hf
            pltpu.VMEM((B, H), jnp.float32),               # cf
            pltpu.VMEM((B, H), jnp.float32),               # hb
            pltpu.VMEM((B, H), jnp.float32),               # cb
        ],
    )
    out_f, out_b = pl.pallas_call(
        _bilstm_chunk_kernel,
        out_shape=(jax.ShapeDtypeStruct((T_r, B, H), jnp.float32),
                   jax.ShapeDtypeStruct((T_r, B, H), jnp.float32)),
        grid_spec=grid_spec,
        compiler_params=pltpu.CompilerParams(
            dimension_semantics=("arbitrary",),            # sequential recurrence
            vmem_limit_bytes=64 * 1024 * 1024),
    )(lens_b1, x, x, wih_f, whh_f, b_f, wih_b, whh_b, b_b)
    return out_f, out_b


# --------------------------------------------------------------------------
# Parameter init (deterministic, shapes from Encoder.__init__)
# --------------------------------------------------------------------------
def init_params(key, C, K, H, n_conv):
    ks = iter(jax.random.split(key, 64))
    nxt = lambda: next(ks)
    conv_w = [0.1 * jax.random.normal(nxt(), (C, C, K), jnp.float32) for _ in range(n_conv)]
    conv_b = [0.1 * jax.random.normal(nxt(), (C,), jnp.float32) for _ in range(n_conv)]
    bn_gamma = [1.0 + 0.1 * jax.random.normal(nxt(), (C,), jnp.float32) for _ in range(n_conv)]
    bn_beta = [0.1 * jax.random.normal(nxt(), (C,), jnp.float32) for _ in range(n_conv)]
    bn_mean = [0.1 * jax.random.normal(nxt(), (C,), jnp.float32) for _ in range(n_conv)]
    bn_var = [0.5 + jnp.abs(jax.random.normal(nxt(), (C,), jnp.float32)) for _ in range(n_conv)]

    def lstm_dir():
        wih = 0.1 * jax.random.normal(nxt(), (4 * H, C), jnp.float32)   # weight_ih_l0
        whh = 0.1 * jax.random.normal(nxt(), (4 * H, H), jnp.float32)   # weight_hh_l0
        bih = 0.1 * jax.random.normal(nxt(), (4 * H,), jnp.float32)
        bhh = 0.1 * jax.random.normal(nxt(), (4 * H,), jnp.float32)
        return wih, whh, bih, bhh

    return dict(conv_w=conv_w, conv_b=conv_b, bn_gamma=bn_gamma, bn_beta=bn_beta,
                bn_mean=bn_mean, bn_var=bn_var, lstm_f=lstm_dir(), lstm_b=lstm_dir())


# --------------------------------------------------------------------------
# Encoder.forward (eval mode)
# --------------------------------------------------------------------------
def encoder_forward(x_bct, input_lengths, params, eps=1e-5,
                    conv_t_tile=128, lstm_t_tile=64):
    """x_bct: (B, C, T) like the PyTorch NCW conv input.
    input_lengths: host-side ints sorted descending (pack_padded_sequence
    moves them to numpy in the reference anyway).
    Tile defaults are sized for v5e/v6e; halve them on v7x (64 MiB VMEM/TC)."""
    B, C, T = x_bct.shape
    n_conv = len(params['conv_w'])
    h = jnp.transpose(x_bct, (2, 0, 1)).astype(jnp.float32)      # (T, B, C)

    def w_to_kcc(w):                                             # (Cout, Cin, K) -> (K, Cin, Cout)
        return jnp.transpose(w, (2, 1, 0)).astype(jnp.bfloat16)

    def bn_scale_shift(i):
        s = params['bn_gamma'][i] / jnp.sqrt(params['bn_var'][i] + eps)
        sh = params['bn_beta'][i] - params['bn_mean'][i] * s
        return s, sh

    ones = jnp.ones((1, 1, C), jnp.float32)
    zeros = jnp.zeros((1, 1, C), jnp.float32)

    # ModuleList entries 0 and 1 (ConvNorm -> relu, then BatchNorm1d -> relu),
    # both fused into a single kernel launch: relu(relu(conv+bias)*s0+sh0).
    s0, sh0 = bn_scale_shift(0)
    h = conv_bn_relu(h, w_to_kcc(params['conv_w'][0]),
                     ones, params['conv_b'][0].reshape(1, 1, C),
                     s0.reshape(1, 1, C), sh0.reshape(1, 1, C),
                     t_tile=conv_t_tile)
    # Remaining entries: Sequential(ConvNorm, BatchNorm1d) -> relu; the conv
    # bias is folded into the BatchNorm affine.
    for i in range(1, n_conv):
        s, sh = bn_scale_shift(i)
        shift = (params['conv_b'][i] - params['bn_mean'][i]) * s + params['bn_beta'][i]
        h = conv_bn_relu(h, w_to_kcc(params['conv_w'][i]),
                         s.reshape(1, 1, C), shift.reshape(1, 1, C),
                         ones, zeros, t_tile=conv_t_tile)

    # Bidirectional, length-masked LSTM (h is already (T, B, C)).
    wih_f, whh_f, bih_f, bhh_f = params['lstm_f']
    wih_b, whh_b, bih_b, bhh_b = params['lstm_b']
    lens = jnp.asarray(input_lengths, jnp.int32).reshape(B, 1)
    out_f, out_b = bilstm(
        h, lens,
        wih_f.T.astype(jnp.bfloat16), whh_f.T.astype(jnp.float32),
        (bih_f + bhh_f).reshape(1, 1, -1).astype(jnp.float32),
        wih_b.T.astype(jnp.bfloat16), whh_b.T.astype(jnp.float32),
        (bih_b + bhh_b).reshape(1, 1, -1).astype(jnp.float32),
        t_tile=lstm_t_tile)

    out = jnp.concatenate([out_f, out_b], axis=-1)               # (T_r, B, 2H)
    out = jnp.transpose(out, (1, 0, 2))                          # (B, T_r, 2H), batch_first
    max_len = int(max(input_lengths))                            # pad_packed_sequence length
    return out[:, :max_len, :]


if __name__ == "__main__":
    # small but representative: encoder_embedding_dim=32, kernel_size=5,
    # encoder_n_convolutions=3, hidden = 32/2 = 16, batch=2, seq=16.
    # Small tile sizes (8) exercise the multi-tile halo/chunk paths.
    B, C, T, K, H, NCONV = 2, 32, 16, 5, 16, 3
    key = jax.random.PRNGKey(0)
    kx, kp = jax.random.split(key)
    params = init_params(kp, C, K, H, NCONV)
    x = jax.random.normal(kx, (B, C, T), jnp.float32)
    input_lengths = [16, 11]                                     # sorted descending

    out = encoder_forward(x, input_lengths, params,
                          conv_t_tile=8, lstm_t_tile=8)
    out = jax.block_until_ready(out)

    assert out.shape == (B, max(input_lengths), 2 * H), out.shape
    assert bool(jnp.all(jnp.isfinite(out)))
    # pad_packed_sequence zero-pads past each sequence's length
    assert bool(jnp.all(out[1, input_lengths[1]:, :] == 0.0))
    print("KERNEL_OK")
</pallas_src>

<mosaic_0001>
module attributes {stable_mosaic.version = 11 : i64} {
  func.func @_conv_bn_relu_kernel(%arg0: i32, %arg1: memref<8x2x32xbf16, #tpu.memory_space<vmem>>, %arg2: memref<4x2x32xbf16, #tpu.memory_space<vmem>>, %arg3: memref<5x32x32xbf16, #tpu.memory_space<vmem>>, %arg4: memref<1x1x32xf32, #tpu.memory_space<vmem>>, %arg5: memref<1x1x32xf32, #tpu.memory_space<vmem>>, %arg6: memref<1x1x32xf32, #tpu.memory_space<vmem>>, %arg7: memref<1x1x32xf32, #tpu.memory_space<vmem>>, %arg8: memref<8x2x32xf32, #tpu.memory_space<vmem>>, %arg9: memref<12x2x32xbf16, #tpu.memory_space<vmem>>) attributes {dimension_semantics = [#tpu.dimension_semantics<parallel>], iteration_bounds = array<i64: 2>, scalar_prefetch = 0 : i64, scratch_operands = 1 : i64, tpu.core_type = #tpu.core_type<tc>, window_params = [{transform_indices = @transform_0, window_bounds = array<i64: 8, 2, 32>}, {transform_indices = @transform_1, window_bounds = array<i64: 4, 2, 32>}, {pipeline_mode = #tpu.pipeline_mode<synchronous>, transform_indices = @transform_2, window_bounds = array<i64: 5, 32, 32>}, {pipeline_mode = #tpu.pipeline_mode<synchronous>, transform_indices = @transform_3, window_bounds = array<i64: 1, 1, 32>}, {pipeline_mode = #tpu.pipeline_mode<synchronous>, transform_indices = @transform_4, window_bounds = array<i64: 1, 1, 32>}, {pipeline_mode = #tpu.pipeline_mode<synchronous>, transform_indices = @transform_5, window_bounds = array<i64: 1, 1, 32>}, {pipeline_mode = #tpu.pipeline_mode<synchronous>, transform_indices = @transform_6, window_bounds = array<i64: 1, 1, 32>}, {transform_indices = @transform_7, window_bounds = array<i64: 8, 2, 32>}]} {
    %c0 = arith.constant 0 : index
    %c0_0 = arith.constant 0 : index
    %c0_1 = arith.constant 0 : index
    %0 = vector.load %arg1[%c0, %c0_0, %c0_1] : memref<8x2x32xbf16, #tpu.memory_space<vmem>>, vector<8x2x32xbf16>
    %c0_2 = arith.constant 0 : index
    %c0_3 = arith.constant 0 : index
    %c0_4 = arith.constant 0 : index
    %1 = vector.load %arg9[%c0_2, %c0_3, %c0_4] : memref<12x2x32xbf16, #tpu.memory_space<vmem>>, vector<8x2x32xbf16>
    tpu.vector_store %arg9[%c0_2, %c0_3, %c0_4], %0 {strides = array<i32>} : memref<12x2x32xbf16, #tpu.memory_space<vmem>>, vector<8x2x32xbf16>,
    %c0_5 = arith.constant 0 : index
    %c0_6 = arith.constant 0 : index
    %c0_7 = arith.constant 0 : index
    %2 = vector.load %arg2[%c0_5, %c0_6, %c0_7] : memref<4x2x32xbf16, #tpu.memory_space<vmem>>, vector<4x2x32xbf16>
    %c8 = arith.constant 8 : index
    %c0_8 = arith.constant 0 : index
    %c0_9 = arith.constant 0 : index
    %3 = vector.load %arg9[%c8, %c0_8, %c0_9] : memref<12x2x32xbf16, #tpu.memory_space<vmem>>, vector<4x2x32xbf16>
    tpu.vector_store %arg9[%c8, %c0_8, %c0_9], %2 {strides = array<i32>} : memref<12x2x32xbf16, #tpu.memory_space<vmem>>, vector<4x2x32xbf16>,
    %cst = arith.constant 0.000000e+00 : f32
    %4 = vector.broadcast %cst : f32 to vector<8x2x32xf32>
    %c0_10 = arith.constant 0 : index
    %c0_11 = arith.constant 0 : index
    %c0_12 = arith.constant 0 : index
    %5 = vector.load %arg9[%c0_10, %c0_11, %c0_12] : memref<12x2x32xbf16, #tpu.memory_space<vmem>>, vector<8x2x32xbf16>
    %c0_13 = arith.constant 0 : index
    %c0_14 = arith.constant 0 : index
    %c0_15 = arith.constant 0 : index
    %6 = vector.load %arg3[%c0_13, %c0_14, %c0_15] : memref<5x32x32xbf16, #tpu.memory_space<vmem>>, vector<1x32x32xbf16>
    %7 = vector.shape_cast %6 : vector<1x32x32xbf16> to vector<32x32xbf16>
    %cst_16 = arith.constant dense<0.000000e+00> : vector<8x2x32xf32>
    %8 = tpu.matmul %5, %7, %cst_16 {dimension_numbers = #tpu.dot_dimension_numbers<[2], [0], [0, 1], [1], [0, 0, 0, 1, 1, 1], [], []>} : vector<8x2x32xbf16>, vector<32x32xbf16>, vector<8x2x32xf32> -> vector<8x2x32xf32>
    %9 = arith.addf %4, %8 : vector<8x2x32xf32>
    %c1 = arith.constant 1 : index
    %c0_17 = arith.constant 0 : index
    %c0_18 = arith.constant 0 : index
    %10 = vector.load %arg9[%c1, %c0_17, %c0_18] : memref<12x2x32xbf16, #tpu.memory_space<vmem>>, vector<8x2x32xbf16>
    %c1_19 = arith.constant 1 : index
    %c0_20 = arith.constant 0 : index
    %c0_21 = arith.constant 0 : index
    %11 = vector.load %arg3[%c1_19, %c0_20, %c0_21] : memref<5x32x32xbf16, #tpu.memory_space<vmem>>, vector<1x32x32xbf16>
    %12 = vector.shape_cast %11 : vector<1x32x32xbf16> to vector<32x32xbf16>
    %cst_22 = arith.constant dense<0.000000e+00> : vector<8x2x32xf32>
    %13 = tpu.matmul %10, %12, %cst_22 {dimension_numbers = #tpu.dot_dimension_numbers<[2], [0], [0, 1], [1], [0, 0, 0, 1, 1, 1], [], []>} : vector<8x2x32xbf16>, vector<32x32xbf16>, vector<8x2x32xf32> -> vector<8x2x32xf32>
    %14 = arith.addf %9, %13 : vector<8x2x32xf32>
    %c2 = arith.constant 2 : index
    %c0_23 = arith.constant 0 : index
    %c0_24 = arith.constant 0 : index
    %15 = vector.load %arg9[%c2, %c0_23, %c0_24] : memref<12x2x32xbf16, #tpu.memory_space<vmem>>, vector<8x2x32xbf16>
    %c2_25 = arith.constant 2 : index
    %c0_26 = arith.constant 0 : index
    %c0_27 = arith.constant 0 : index
    %16 = vector.load %arg3[%c2_25, %c0_26, %c0_27] : memref<5x32x32xbf16, #tpu.memory_space<vmem>>, vector<1x32x32xbf16>
    %17 = vector.shape_cast %16 : vector<1x32x32xbf16> to vector<32x32xbf16>
    %cst_28 = arith.constant dense<0.000000e+00> : vector<8x2x32xf32>
    %18 = tpu.matmul %15, %17, %cst_28 {dimension_numbers = #tpu.dot_dimension_numbers<[2], [0], [0, 1], [1], [0, 0, 0, 1, 1, 1], [], []>} : vector<8x2x32xbf16>, vector<32x32xbf16>, vector<8x2x32xf32> -> vector<8x2x32xf32>
    %19 = arith.addf %14, %18 : vector<8x2x32xf32>
    %c3 = arith.constant 3 : index
    %c0_29 = arith.constant 0 : index
    %c0_30 = arith.constant 0 : index
    %20 = vector.load %arg9[%c3, %c0_29, %c0_30] : memref<12x2x32xbf16, #tpu.memory_space<vmem>>, vector<8x2x32xbf16>
    %c3_31 = arith.constant 3 : index
    %c0_32 = arith.constant 0 : index
    %c0_33 = arith.constant 0 : index
    %21 = vector.load %arg3[%c3_31, %c0_32, %c0_33] : memref<5x32x32xbf16, #tpu.memory_space<vmem>>, vector<1x32x32xbf16>
    %22 = vector.shape_cast %21 : vector<1x32x32xbf16> to vector<32x32xbf16>
    %cst_34 = arith.constant dense<0.000000e+00> : vector<8x2x32xf32>
    %23 = tpu.matmul %20, %22, %cst_34 {dimension_numbers = #tpu.dot_dimension_numbers<[2], [0], [0, 1], [1], [0, 0, 0, 1, 1, 1], [], []>} : vector<8x2x32xbf16>, vector<32x32xbf16>, vector<8x2x32xf32> -> vector<8x2x32xf32>
    %24 = arith.addf %19, %23 : vector<8x2x32xf32>
    %c4 = arith.constant 4 : index
    %c0_35 = arith.constant 0 : index
    %c0_36 = arith.constant 0 : index
    %25 = vector.load %arg9[%c4, %c0_35, %c0_36] : memref<12x2x32xbf16, #tpu.memory_space<vmem>>, vector<8x2x32xbf16>
    %c4_37 = arith.constant 4 : index
    %c0_38 = arith.constant 0 : index
    %c0_39 = arith.constant 0 : index
    %26 = vector.load %arg3[%c4_37, %c0_38, %c0_39] : memref<5x32x32xbf16, #tpu.memory_space<vmem>>, vector<1x32x32xbf16>
    %27 = vector.shape_cast %26 : vector<1x32x32xbf16> to vector<32x32xbf16>
    %cst_40 = arith.constant dense<0.000000e+00> : vector<8x2x32xf32>
    %28 = tpu.matmul %25, %27, %cst_40 {dimension_numbers = #tpu.dot_dimension_numbers<[2], [0], [0, 1], [1], [0, 0, 0, 1, 1, 1], [], []>} : vector<8x2x32xbf16>, vector<32x32xbf16>, vector<8x2x32xf32> -> vector<8x2x32xf32>
    %29 = arith.addf %24, %28 : vector<8x2x32xf32>
    %c0_41 = arith.constant 0 : index
    %c0_42 = arith.constant 0 : index
    %c0_43 = arith.constant 0 : index
    %30 = vector.load %arg4[%c0_41, %c0_42, %c0_43] : memref<1x1x32xf32, #tpu.memory_space<vmem>>, vector<1x1x32xf32>
    %31 = vector.broadcast %30 : vector<1x1x32xf32> to vector<8x2x32xf32>
    %32 = arith.mulf %29, %31 : vector<8x2x32xf32>
    %c0_44 = arith.constant 0 : index
    %c0_45 = arith.constant 0 : index
    %c0_46 = arith.constant 0 : index
    %33 = vector.load %arg5[%c0_44, %c0_45, %c0_46] : memref<1x1x32xf32, #tpu.memory_space<vmem>>, vector<1x1x32xf32>
    %34 = vector.broadcast %33 : vector<1x1x32xf32> to vector<8x2x32xf32>
    %35 = arith.addf %32, %34 : vector<8x2x32xf32>
    %cst_47 = arith.constant 0.000000e+00 : f32
    %36 = vector.broadcast %cst_47 : f32 to vector<8x2x32xf32>
    %37 = arith.maximumf %35, %36 : vector<8x2x32xf32>
    %c0_48 = arith.constant 0 : index
    %c0_49 = arith.constant 0 : index
    %c0_50 = arith.constant 0 : index
    %38 = vector.load %arg6[%c0_48, %c0_49, %c0_50] : memref<1x1x32xf32, #tpu.memory_space<vmem>>, vector<1x1x32xf32>
    %39 = vector.broadcast %38 : vector<1x1x32xf32> to vector<8x2x32xf32>
    %40 = arith.mulf %37, %39 : vector<8x2x32xf32>
    %c0_51 = arith.constant 0 : index
    %c0_52 = arith.constant 0 : index
    %c0_53 = arith.constant 0 : index
    %41 = vector.load %arg7[%c0_51, %c0_52, %c0_53] : memref<1x1x32xf32, #tpu.memory_space<vmem>>, vector<1x1x32xf32>
    %42 = vector.broadcast %41 : vector<1x1x32xf32> to vector<8x2x32xf32>
    %43 = arith.addf %40, %42 : vector<8x2x32xf32>
    %cst_54 = arith.constant 0.000000e+00 : f32
    %44 = vector.broadcast %cst_54 : f32 to vector<8x2x32xf32>
    %45 = arith.maximumf %43, %44 : vector<8x2x32xf32>
    %c0_55 = arith.constant 0 : index
    %c0_56 = arith.constant 0 : index
    %c0_57 = arith.constant 0 : index
    %46 = vector.load %arg8[%c0_55, %c0_56, %c0_57] : memref<8x2x32xf32, #tpu.memory_space<vmem>>, vector<8x2x32xf32>
    tpu.vector_store %arg8[%c0_55, %c0_56, %c0_57], %45 {strides = array<i32>} : memref<8x2x32xf32, #tpu.memory_space<vmem>>, vector<8x2x32xf32>,
    return
  }
  func.func @transform_0(%arg0: i32) -> (i32, i32, i32) {
    %c0_i32 = arith.constant 0 : i32
    %c0_i32_0 = arith.constant 0 : i32
    %c0_i32_1 = arith.constant 0 : i32
    return %arg0, %c0_i32, %c0_i32_0 : i32, i32, i32
  }
  func.func @transform_1(%arg0: i32) -> (i32, i32, i32) {
    %c1_i32 = arith.constant 1 : i32
    %0 = arith.addi %arg0, %c1_i32 : i32
    %c2_i32 = arith.constant 2 : i32
    %1 = arith.muli %0, %c2_i32 : i32
    %c0_i32 = arith.constant 0 : i32
    %c0_i32_0 = arith.constant 0 : i32
    %c0_i32_1 = arith.constant 0 : i32
    return %1, %c0_i32, %c0_i32_0 : i32, i32, i32
  }
  func.func @transform_2(%arg0: i32) -> (i32, i32, i32) {
    %c0_i32 = arith.constant 0 : i32
    %c0_i32_0 = arith.constant 0 : i32
    %c0_i32_1 = arith.constant 0 : i32
    %c0_i32_2 = arith.constant 0 : i32
    return %c0_i32, %c0_i32_0, %c0_i32_1 : i32, i32, i32
  }
  func.func @transform_3(%arg0: i32) -> (i32, i32, i32) {
    %c0_i32 = arith.constant 0 : i32
    %c0_i32_0 = arith.constant 0 : i32
    %c0_i32_1 = arith.constant 0 : i32
    %c0_i32_2 = arith.constant 0 : i32
    return %c0_i32, %c0_i32_0, %c0_i32_1 : i32, i32, i32
  }
  func.func @transform_4(%arg0: i32) -> (i32, i32, i32) {
    %c0_i32 = arith.constant 0 : i32
    %c0_i32_0 = arith.constant 0 : i32
    %c0_i32_1 = arith.constant 0 : i32
    %c0_i32_2 = arith.constant 0 : i32
    return %c0_i32, %c0_i32_0, %c0_i32_1 : i32, i32, i32
  }
  func.func @transform_5(%arg0: i32) -> (i32, i32, i32) {
    %c0_i32 = arith.constant 0 : i32
    %c0_i32_0 = arith.constant 0 : i32
    %c0_i32_1 = arith.constant 0 : i32
    %c0_i32_2 = arith.constant 0 : i32
    return %c0_i32, %c0_i32_0, %c0_i32_1 : i32, i32, i32
  }
  func.func @transform_6(%arg0: i32) -> (i32, i32, i32) {
    %c0_i32 = arith.constant 0 : i32
    %c0_i32_0 = arith.constant 0 : i32
    %c0_i32_1 = arith.constant 0 : i32
    %c0_i32_2 = arith.constant 0 : i32
    return %c0_i32, %c0_i32_0, %c0_i32_1 : i32, i32, i32
  }
  func.func @transform_7(%arg0: i32) -> (i32, i32, i32) {
    %c0_i32 = arith.constant 0 : i32
    %c0_i32_0 = arith.constant 0 : i32
    %c0_i32_1 = arith.constant 0 : i32
    return %arg0, %c0_i32, %c0_i32_0 : i32, i32, i32
  }
}

</mosaic_0001>

<llo_original>
// kernel: tpu_custom_call.1
$region0: #{tpu_custom_call.1}
  #allocation0 [shape = 'u32[]', space=smem, size = 0x4, offset = 0x4, fixed_abs, tag = 'smem constant byte address 0x4 - core index']
  #allocation1 [shape = 'u32[144,128]{1,0:T(1,128)}', space=vmem, size = 0x12000, scoped, tag = 'internal scratch']
  #allocation2 [shape = 'bf16[12,2,32]{2,1,0:T(2,128)(2,1)}', space=vmem, size = 0x1800, scoped, tag = 'scratch operand']
  %s0 = inlined_call_operand.hbm [shape: bf16[20,2,32], index: 0, kind: input, shape index: {}]
  %s1 = inlined_call_operand.hbm [shape: bf16[20,2,32], index: 1, kind: input, shape index: {}]
  %s2 = inlined_call_operand.hbm [shape: bf16[5,32,32], index: 2, kind: input, shape index: {}]
  %s3 = inlined_call_operand.hbm [shape: f32[1,1,32], index: 3, kind: input, shape index: {}]
  %s4 = inlined_call_operand.hbm [shape: f32[1,1,32], index: 4, kind: input, shape index: {}]
  %s5 = inlined_call_operand.hbm [shape: f32[1,1,32], index: 5, kind: input, shape index: {}]
  %s6 = inlined_call_operand.hbm [shape: f32[1,1,32], index: 6, kind: input, shape index: {}]
  %s7 = inlined_call_operand.hbm [shape: f32[16,2,32], index: 7, kind: output, shape index: {}]
  %s8 = sld [smem:[#allocation0]]
  $region89: #{tpu_custom_call.1} parent=0
    _
  %s10 = ssub.s32 1, %s8
  %s11 = scalar_select 0, %s10, %s8
  $region1: #{tpu_custom_call.1} parent=0
    #allocation3 [shape = 'u8[8192]{0}', space=vmem, size = 0x2000, scoped, tag = 'input window, operand 0']
    #allocation4 [shape = 's32[2]{0}', space=sflag, size = 0x8, scoped, tag = 'scoped memory for tpu_custom_call.1']
    #allocation5 [shape = 's32[2]{0}', space=sflag, size = 0x8, scoped, tag = 'scoped memory for tpu_custom_call.1']
    #allocation6 [shape = 'u8[4096]{0}', space=vmem, size = 0x1000, scoped, tag = 'input window, operand 1']
    #allocation7 [shape = 's32[2]{0}', space=sflag, size = 0x8, scoped, tag = 'scoped memory for tpu_custom_call.1']
    #allocation8 [shape = 'u8[40960]{0}', space=vmem, size = 0xa000, scoped, tag = 'input window, operand 2, single buffered']
    #allocation9 [shape = 'u8[512]{0}', space=vmem, size = 0x400, scoped, tag = 'input window, operand 3, single buffered']
    #allocation10 [shape = 's32[1]{0}', space=sflag, size = 0x4, scoped, tag = 'scoped memory for tpu_custom_call.1']
    #allocation11 [shape = 'u8[512]{0}', space=vmem, size = 0x400, scoped, tag = 'input window, operand 4, single buffered']
    #allocation12 [shape = 'u8[512]{0}', space=vmem, size = 0x400, scoped, tag = 'input window, operand 5, single buffered']
    #allocation13 [shape = 's32[1]{0}', space=sflag, size = 0x4, scoped, tag = 'scoped memory for tpu_custom_call.1']
    #allocation14 [shape = 'u8[512]{0}', space=vmem, size = 0x400, scoped, tag = 'input window, operand 6, single buffered']
    #allocation15 [shape = 'u8[16384]{0}', space=vmem, size = 0x4000, scoped, tag = 'output window, operand 0']
    %12 = vsyncpa [#allocation4], 0
    %s13 = scalar_lea.sflag [#allocation4], 1
    %14 = vsyncpa %s13, 0
    %15 = vsyncpa [#allocation7], 0
    %s16 = scalar_lea.sflag [#allocation7], 1
    %17 = vsyncpa %s16, 0
    %18 = vsyncpa [#allocation10], 0
    %19 = vsyncpa [#allocation13], 0
    %20 = vsyncpa [#allocation5], 0
    %s21 = scalar_lea.sflag [#allocation5], 1
    %22 = vsyncpa %s21, 0
    loop: start=0, step=1, limit=4
    $region2: #{tpu_custom_call.1} parent=1 // loop_pre_header
      _
    $region3: #{tpu_custom_call.1} parent=1 // loop_header
      %s24 = sphi 0, %s28
      %p25 = scmp.ge.s32.totalorder %s24, 4
      %s34 = sphi 0, %s36
      %s37 = sphi 0, %s34
      %s38 = sphi 0, %s37
      %s54 = sphi 0, %s38
      %s64 = sphi 0, %s66
      %s67 = sphi 0, %s64
      %s68 = sphi 0, %s67
      %s84 = sphi 0, %s68
      %s88 = sphi 0, %s88
      %s90 = sphi 0, %s88
      %s91 = sphi 0, %s90
      %s105 = sphi 0, %s91
      %s109 = sphi 0, %s109
      %s111 = sphi 0, %s109
      %s112 = sphi 0, %s111
      %s126 = sphi 0, %s112
      %s130 = sphi 0, %s130
      %s132 = sphi 0, %s130
      %s133 = sphi 0, %s132
      %s147 = sphi 0, %s133
      %s151 = sphi 0, %s151
      %s153 = sphi 0, %s151
      %s154 = sphi 0, %s153
      %s168 = sphi 0, %s154
      %s172 = sphi 0, %s172
      %s174 = sphi 0, %s172
      %s175 = sphi 0, %s174
      %s189 = sphi 0, %s175
      %s195 = sphi 0, %s197
      %s198 = sphi 0, %s195
      %s199 = sphi 0, %s198
      %s215 = sphi 0, %s199
    $region4: #{tpu_custom_call.1} parent=1 // loop_header_branch
      %27 = sbr.rel (%p25) target = $region8
    $region5: #{tpu_custom_call.1} parent=1 // loop_body
      %s29 = ssub.s32 %s24, 1
      %s30 = ssub.s32 %s24, 2
      %s31 = sadd.s32 %s24, 1
      %s32 = ssub.s32 %s24, %s31
      %p33 = scmp.eq.s32.totalorder %s32, 0
      %s35 = sadd.s32 %s34, 1
      %s36 = scalar_select %p33, %s34, %s35
      %p39 = pneg %p33
      %p40 = scmp.eq.s32.totalorder %s24, 1
      %p41 = por %p39, %p40
      %p42 = scmp.ne.s32.totalorder %s34, %s37
      %p43 = scmp.eq.s32.totalorder %s24, 0
      %p44 = por %p42, %p43
      %p45 = scmp.ne.s32.totalorder %s34, %s37
      %p46 = scmp.eq.s32.totalorder %s29, 1
      %p47 = por %p45, %p46
      %p48 = scmp.ne.s32.totalorder %s37, %s38
      %p49 = scmp.eq.s32.totalorder %s29, 0
      %p50 = por %p48, %p49
      %p51 = scmp.ne.s32.totalorder %s37, %s38
      %p52 = scmp.eq.s32.totalorder %s30, 1
      %p53 = por %p51, %p52
      %p55 = scmp.ne.s32.totalorder %s38, %s54
      %p56 = scmp.eq.s32.totalorder %s30, 0
      %p57 = por %p55, %p56
      %s58 = sadd.s32 %s24, 1
      %s59 = smul.u32 %s58, 2
      %s60 = sadd.s32 %s31, 1
      %s61 = smul.u32 %s60, 2
      %s62 = ssub.s32 %s59, %s61
      %p63 = scmp.eq.s32.totalorder %s62, 0
      %s65 = sadd.s32 %s64, 1
      %s66 = scalar_select %p63, %s64, %s65
      %p69 = pneg %p63
      %p70 = scmp.eq.s32.totalorder %s24, 1
      %p71 = por %p69, %p70
      %p72 = scmp.ne.s32.totalorder %s64, %s67
      %p73 = scmp.eq.s32.totalorder %s24, 0
      %p74 = por %p72, %p73
      %p75 = scmp.ne.s32.totalorder %s64, %s67
      %p76 = scmp.eq.s32.totalorder %s29, 1
      %p77 = por %p75, %p76
      %p78 = scmp.ne.s32.totalorder %s67, %s68
      %p79 = scmp.eq.s32.totalorder %s29, 0
      %p80 = por %p78, %p79
      %p81 = scmp.ne.s32.totalorder %s67, %s68
      %p82 = scmp.eq.s32.totalorder %s30, 1
      %p83 = por %p81, %p82
      %p85 = scmp.ne.s32.totalorder %s68, %s84
      %p86 = scmp.eq.s32.totalorder %s30, 0
      %p87 = por %p85, %p86
      %s89 = sadd.s32 %s88, 1
      %p92 = scmp.eq.s32.totalorder %s24, 1
      %p93 = scmp.ne.s32.totalorder %s88, %s90
      %p94 = scmp.eq.s32.totalorder %s24, 0
      %p95 = por %p93, %p94
      %p96 = scmp.ne.s32.totalorder %s88, %s90
      %p97 = scmp.eq.s32.totalorder %s29, 1
      %p98 = por %p96, %p97
      %p99 = scmp.ne.s32.totalorder %s90, %s91
      %p100 = scmp.eq.s32.totalorder %s29, 0
      %p101 = por %p99, %p100
      %p102 = scmp.ne.s32.totalorder %s90, %s91
      %p103 = scmp.eq.s32.totalorder %s30, 1
      %p104 = por %p102, %p103
      %p106 = scmp.ne.s32.totalorder %s91, %s105
      %p107 = scmp.eq.s32.totalorder %s30, 0
      %p108 = por %p106, %p107
      %s110 = sadd.s32 %s109, 1
      %p113 = scmp.eq.s32.totalorder %s24, 1
      %p114 = scmp.ne.s32.totalorder %s109, %s111
      %p115 = scmp.eq.s32.totalorder %s24, 0
      %p116 = por %p114, %p115
      %p117 = scmp.ne.s32.totalorder %s109, %s111
      %p118 = scmp.eq.s32.totalorder %s29, 1
      %p119 = por %p117, %p118
      %p120 = scmp.ne.s32.totalorder %s111, %s112
      %p121 = scmp.eq.s32.totalorder %s29, 0
      %p122 = por %p120, %p121
      %p123 = scmp.ne.s32.totalorder %s111, %s112
      %p124 = scmp.eq.s32.totalorder %s30, 1
      %p125 = por %p123, %p124
      %p127 = scmp.ne.s32.totalorder %s112, %s126
      %p128 = scmp.eq.s32.totalorder %s30, 0
      %p129 = por %p127, %p128
      %s131 = sadd.s32 %s130, 1
      %p134 = scmp.eq.s32.totalorder %s24, 1
      %p135 = scmp.ne.s32.totalorder %s130, %s132
      %p136 = scmp.eq.s32.totalorder %s24, 0
      %p137 = por %p135, %p136
      %p138 = scmp.ne.s32.totalorder %s130, %s132
      %p139 = scmp.eq.s32.totalorder %s29, 1
      %p140 = por %p138, %p139
      %p141 = scmp.ne.s32.totalorder %s132, %s133
      %p142 = scmp.eq.s32.totalorder %s29, 0
      %p143 = por %p141, %p142
      %p144 = scmp.ne.s32.totalorder %s132, %s133
      %p145 = scmp.eq.s32.totalorder %s30, 1
      %p146 = por %p144, %p145
      %p148 = scmp.ne.s32.totalorder %s133, %s147
      %p149 = scmp.eq.s32.totalorder %s30, 0
      %p150 = por %p148, %p149
      %s152 = sadd.s32 %s151, 1
      %p155 = scmp.eq.s32.totalorder %s24, 1
      %p156 = scmp.ne.s32.totalorder %s151, %s153
      %p157 = scmp.eq.s32.totalorder %s24, 0
      %p158 = por %p156, %p157
      %p159 = scmp.ne.s32.totalorder %s151, %s153
      %p160 = scmp.eq.s32.totalorder %s29, 1
      %p161 = por %p159, %p160
      %p162 = scmp.ne.s32.totalorder %s153, %s154
      %p163 = scmp.eq.s32.totalorder %s29, 0
      %p164 = por %p162, %p163
      %p165 = scmp.ne.s32.totalorder %s153, %s154
      %p166 = scmp.eq.s32.totalorder %s30, 1
      %p167 = por %p165, %p166
      %p169 = scmp.ne.s32.totalorder %s154, %s168
      %p170 = scmp.eq.s32.totalorder %s30, 0
      %p171 = por %p169, %p170
      %s173 = sadd.s32 %s172, 1
      %p176 = scmp.eq.s32.totalorder %s24, 1
      %p177 = scmp.ne.s32.totalorder %s172, %s174
      %p178 = scmp.eq.s32.totalorder %s24, 0
      %p179 = por %p177, %p178
      %p180 = scmp.ne.s32.totalorder %s172, %s174
      %p181 = scmp.eq.s32.totalorder %s29, 1
      %p182 = por %p180, %p181
      %p183 = scmp.ne.s32.totalorder %s174, %s175
      %p184 = scmp.eq.s32.totalorder %s29, 0
      %p185 = por %p183, %p184
      %p186 = scmp.ne.s32.totalorder %s174, %s175
      %p187 = scmp.eq.s32.totalorder %s30, 1
      %p188 = por %p186, %p187
      %p190 = scmp.ne.s32.totalorder %s175, %s189
      %p191 = scmp.eq.s32.totalorder %s30, 0
      %p192 = por %p190, %p191
      %s193 = ssub.s32 %s24, %s31
      %p194 = scmp.eq.s32.totalorder %s193, 0
      %s196 = sadd.s32 %s195, 1
      %s197 = scalar_select %p194, %s195, %s196
      %p200 = pneg %p194
      %p201 = scmp.eq.s32.totalorder %s24, 1
      %p202 = por %p200, %p201
      %p203 = scmp.ne.s32.totalorder %s195, %s198
      %p204 = scmp.eq.s32.totalorder %s24, 0
      %p205 = por %p203, %p204
      %p206 = scmp.ne.s32.totalorder %s195, %s198
      %p207 = scmp.eq.s32.totalorder %s29, 1
      %p208 = por %p206, %p207
      %p209 = scmp.ne.s32.totalorder %s198, %s199
      %p210 = scmp.eq.s32.totalorder %s29, 0
      %p211 = por %p209, %p210
      %p212 = scmp.ne.s32.totalorder %s198, %s199
      %p213 = scmp.eq.s32.totalorder %s30, 1
      %p214 = por %p212, %p213
      %p216 = scmp.ne.s32.totalorder %s199, %s215
      %p217 = scmp.eq.s32.totalorder %s30, 0
      %p218 = por %p216, %p217
      %p219 = scmp.le.s32.totalorder 1, %s24
      %p220 = scmp.lt.s32.totalorder %s24, 3
      %p221 = pnand %p219, %p220
      %p222 = pneg %p221
      // Predicated region
      $region9: #{tpu_custom_call.1} parent=5 // pred_check
        _
      $region10: #{tpu_custom_call.1} parent=5 // pred_check_branch
        %224 = sbr.rel (%p221) target = $region12
      $region11: #{tpu_custom_call.1} parent=5 // pred_region
        %s225 = ssub.s32 %s24, 1
        // Predicated region
        $region13: #{tpu_custom_call.1} parent=11 // pred_check
          %p226 = pneg %p101
        $region14: #{tpu_custom_call.1} parent=11 // pred_check_branch
          %228 = sbr.rel (%p226) target = $region16
        $region15: #{tpu_custom_call.1} parent=11 // pred_region
          %s230 = ssub.s32 1280, 1280
          %231 = vsyncadd [#allocation7], %s230
          %s232 = sshll.u32 [#allocation8], 4
          %s233 = int_to_ptr.vmem [resolvable:$true] %s232
          %238 = dma.hbm_to_vmem [thread:$0]  %s2, 1280, %s233, [#allocation7], 64, 64, 4
        $region16: #{tpu_custom_call.1} parent=11 // pred_fallthru
          _
        // Predicated region
        $region17: #{tpu_custom_call.1} parent=11 // pred_check
          %p239 = pneg %p122
        $region18: #{tpu_custom_call.1} parent=11 // pred_check_branch
          %241 = sbr.rel (%p239) target = $region20
        $region19: #{tpu_custom_call.1} parent=11 // pred_region
          %s243 = ssub.s32 16, 16
          %244 = vsyncadd [#allocation10], %s243
          %s246 = sshll.u32 [#allocation9], 4
          %s247 = int_to_ptr.vmem [resolvable:$true] %s246
          %249 = dma.hbm_to_vmem [thread:$0]  %s3, 16, %s247, [#allocation10]
        $region20: #{tpu_custom_call.1} parent=11 // pred_fallthru
          _
        // Predicated region
        $region21: #{tpu_custom_call.1} parent=11 // pred_check
          %p250 = pneg %p143
        $region22: #{tpu_custom_call.1} parent=11 // pred_check_branch
          %252 = sbr.rel (%p250) target = $region24
        $region23: #{tpu_custom_call.1} parent=11 // pred_region
          %s254 = ssub.s32 16, 16
          %255 = vsyncadd [#allocation10], %s254
          %s257 = sshll.u32 [#allocation11], 4
          %s258 = int_to_ptr.vmem [resolvable:$true] %s257
          %260 = dma.hbm_to_vmem [thread:$0]  %s4, 16, %s258, [#allocation10]
        $region24: #{tpu_custom_call.1} parent=11 // pred_fallthru
          _
        // Predicated region
        $region25: #{tpu_custom_call.1} parent=11 // pred_check
          %p261 = pneg %p164
        $region26: #{tpu_custom_call.1} parent=11 // pred_check_branch
          %263 = sbr.rel (%p261) target = $region28
        $region27: #{tpu_custom_call.1} parent=11 // pred_region
          %s265 = ssub.s32 16, 16
          %266 = vsyncadd [#allocation13], %s265
          %s268 = sshll.u32 [#allocation12], 4
          %s269 = int_to_ptr.vmem [resolvable:$true] %s268
          %271 = dma.hbm_to_vmem [thread:$0]  %s5, 16, %s269, [#allocation13]
        $region28: #{tpu_custom_call.1} parent=11 // pred_fallthru
          _
        // Predicated region
        $region29: #{tpu_custom_call.1} parent=11 // pred_check
          %p272 = pneg %p185
        $region30: #{tpu_custom_call.1} parent=11 // pred_check_branch
          %274 = sbr.rel (%p272) target = $region32
        $region31: #{tpu_custom_call.1} parent=11 // pred_region
          %s276 = ssub.s32 16, 16
          %277 = vsyncadd [#allocation13], %s276
          %s279 = sshll.u32 [#allocation14], 4
          %s280 = int_to_ptr.vmem [resolvable:$true] %s279
          %282 = dma.hbm_to_vmem [thread:$0]  %s6, 16, %s280, [#allocation13]
        $region32: #{tpu_custom_call.1} parent=11 // pred_fallthru
          _
      $region12: #{tpu_custom_call.1} parent=5 // pred_fallthru
        _
      %p283 = scmp.lt.s32.totalorder %s24, 2
      // Predicated region
      $region33: #{tpu_custom_call.1} parent=5 // pred_check
        %p284 = pneg %p283
      $region34: #{tpu_custom_call.1} parent=5 // pred_check_branch
        %286 = sbr.rel (%p284) target = $region36
      $region35: #{tpu_custom_call.1} parent=5 // pred_region
        // Predicated region
        $region37: #{tpu_custom_call.1} parent=35 // pred_check
          %p287 = pneg %p44
        $region38: #{tpu_custom_call.1} parent=35 // pred_check_branch
          %289 = sbr.rel (%p287) target = $region40
        $region39: #{tpu_custom_call.1} parent=35 // pred_region
          %s290 = sand.u32 %s34, 1
          %s291 = scalar_lea.sflag [#allocation4], %s290
          %s292 = sand.u32 %s34, 1
          %s293 = smul.addr %s292, 8
          %s294 = scalar_lea.vmem [#allocation3], %s293
          %s295 = smul.u32 8, %s24
          %s296 = ssub.s32 20, %s295
          %p297 = scmp.lt.s32.totalorder %s296, 8
          %s298 = scalar_select %p297, %s296, 8
          %s299 = smul.u32 16, %s298
          %s301 = ssub.s32 128, %s299
          %302 = vsyncadd %s291, %s301
          %p303 = scmp.ne.s32.totalorder 0, %s299
          %s304 = smul.addr %s295, 16
          %s305 = scalar_lea.hbm %s0, %s304
          %s306 = sshll.u32 %s294, 4
          %s307 = int_to_ptr.vmem [resolvable:$true] %s306
          %s308 = sshll.u32 %s298, 4
          %312 = dma.hbm_to_vmem [thread:$0]  (%p303), %s305, %s308, %s307, %s291, 16, 16, 1
        $region40: #{tpu_custom_call.1} parent=35 // pred_fallthru
          _
        // Predicated region
        $region41: #{tpu_custom_call.1} parent=35 // pred_check
          %p313 = pneg %p74
        $region42: #{tpu_custom_call.1} parent=35 // pred_check_branch
          %315 = sbr.rel (%p313) target = $region44
        $region43: #{tpu_custom_call.1} parent=35 // pred_region
          %s316 = sand.u32 %s24, 1
          %s317 = scalar_lea.sflag [#allocation7], %s316
          %s318 = sand.u32 %s64, 1
          %s319 = smul.addr %s318, 4
          %s320 = scalar_lea.vmem [#allocation6], %s319
          %s321 = sadd.s32 %s24, 1
          %s322 = smul.u32 %s321, 2
          %s323 = smul.u32 4, %s322
          %s325 = ssub.s32 64, 64
          %326 = vsyncadd %s317, %s325
          %s327 = smul.addr %s323, 16
          %s328 = scalar_lea.hbm %s1, %s327
          %s329 = sshll.u32 %s320, 4
          %s330 = int_to_ptr.vmem [resolvable:$true] %s329
          %335 = dma.hbm_to_vmem [thread:$0]  %s328, 64, %s330, %s317, 16, 16, 1
        $region44: #{tpu_custom_call.1} parent=35 // pred_fallthru
          _
      $region36: #{tpu_custom_call.1} parent=5 // pred_fallthru
        _
      %p336 = scmp.le.s32.totalorder 1, %s24
      %p337 = scmp.lt.s32.totalorder %s24, 3
      %p338 = pnand %p336, %p337
      %p339 = pneg %p338
      // Predicated region
      $region45: #{tpu_custom_call.1} parent=5 // pred_check
        _
      $region46: #{tpu_custom_call.1} parent=5 // pred_check_branch
        %341 = sbr.rel (%p338) target = $region48
      $region47: #{tpu_custom_call.1} parent=5 // pred_region
        %s342 = ssub.s32 %s24, 1
        %s343 = sand.u32 %s37, 1
        %s344 = scalar_lea.sflag [#allocation4], %s343
        %s345 = sand.u32 %s37, 1
        %s346 = smul.addr %s345, 8
        %s347 = scalar_lea.vmem [#allocation3], %s346
        // Predicated region
        $region49: #{tpu_custom_call.1} parent=47 // pred_check
          %p348 = pneg %p50
        $region50: #{tpu_custom_call.1} parent=47 // pred_check_branch
          %350 = sbr.rel (%p348) target = $region52
        $region51: #{tpu_custom_call.1} parent=47 // pred_region
          %351 = dma.done %s344, 128
        $region52: #{tpu_custom_call.1} parent=47 // pred_fallthru
          _
        %s352 = sand.u32 %s29, 1
        %s353 = scalar_lea.sflag [#allocation7], %s352
        %s354 = sand.u32 %s67, 1
        %s355 = smul.addr %s354, 4
        %s356 = scalar_lea.vmem [#allocation6], %s355
        // Predicated region
        $region53: #{tpu_custom_call.1} parent=47 // pred_check
          %p357 = pneg %p80
        $region54: #{tpu_custom_call.1} parent=47 // pred_check_branch
          %359 = sbr.rel (%p357) target = $region56
        $region55: #{tpu_custom_call.1} parent=47 // pred_region
          %360 = dma.done %s353, 64
        $region56: #{tpu_custom_call.1} parent=47 // pred_fallthru
          _
        // Predicated region
        $region57: #{tpu_custom_call.1} parent=47 // pred_check
          %p361 = pneg %p101
        $region58: #{tpu_custom_call.1} parent=47 // pred_check_branch
          %363 = sbr.rel (%p361) target = $region60
        $region59: #{tpu_custom_call.1} parent=47 // pred_region
          %364 = dma.done [#allocation7], 1280
        $region60: #{tpu_custom_call.1} parent=47 // pred_fallthru
          _
        // Predicated region
        $region61: #{tpu_custom_call.1} parent=47 // pred_check
          %p365 = pneg %p122
        $region62: #{tpu_custom_call.1} parent=47 // pred_check_branch
          %367 = sbr.rel (%p365) target = $region64
        $region63: #{tpu_custom_call.1} parent=47 // pred_region
          %368 = dma.done [#allocation10], 16
        $region64: #{tpu_custom_call.1} parent=47 // pred_fallthru
          _
        // Predicated region
        $region65: #{tpu_custom_call.1} parent=47 // pred_check
          %p369 = pneg %p143
        $region66: #{tpu_custom_call.1} parent=47 // pred_check_branch
          %371 = sbr.rel (%p369) target = $region68
        $region67: #{tpu_custom_call.1} parent=47 // pred_region
          %372 = dma.done [#allocation10], 16
        $region68: #{tpu_custom_call.1} parent=47 // pred_fallthru
          _
        // Predicated region
        $region69: #{tpu_custom_call.1} parent=47 // pred_check
          %p373 = pneg %p164
        $region70: #{tpu_custom_call.1} parent=47 // pred_check_branch
          %375 = sbr.rel (%p373) target = $region72
        $region71: #{tpu_custom_call.1} parent=47 // pred_region
          %376 = dma.done [#allocation13], 16
        $region72: #{tpu_custom_call.1} parent=47 // pred_fallthru
          _
        // Predicated region
        $region73: #{tpu_custom_call.1} parent=47 // pred_check
          %p377 = pneg %p185
        $region74: #{tpu_custom_call.1} parent=47 // pred_check_branch
          %379 = sbr.rel (%p377) target = $region76
        $region75: #{tpu_custom_call.1} parent=47 // pred_region
          %380 = dma.done [#allocation13], 16
        $region76: #{tpu_custom_call.1} parent=47 // pred_fallthru
          _
        %s381 = sand.u32 %s37, 1
        %s382 = scalar_lea.sflag [#allocation4], %s381
        %s383 = sand.u32 %s37, 1
        %s384 = smul.addr %s383, 8
        %s385 = scalar_lea.vmem [#allocation3], %s384
        %p386 = pneg %p50
        %p387 = pneg %p47
        %s388 = sand.u32 %s29, 1
        %s389 = scalar_lea.sflag [#allocation7], %s388
        %s390 = sand.u32 %s67, 1
        %s391 = smul.addr %s390, 4
        %s392 = scalar_lea.vmem [#allocation6], %s391
        %p393 = pneg %p80
        %p394 = pneg %p77
        %p395 = pneg %p101
        %p396 = pneg %p98
        %p397 = pneg %p122
        %p398 = pneg %p119
        %p399 = pneg %p143
        %p400 = pneg %p140
        %p401 = pneg %p164
        %p402 = pneg %p161
        %p403 = pneg %p185
        %p404 = pneg %p182
        %p405 = pneg %p211
        %p406 = pneg %p208
        %s407 = sand.u32 %s198, 1
        %s408 = scalar_lea.sflag [#allocation5], %s407
        %s409 = sand.u32 %s198, 1
        %s410 = smul.addr %s409, 16
        %s411 = scalar_lea.vmem [#allocation15], %s410
        %s412 = smul.u32 8, %s29
        %s413 = ssub.s32 20, %s412
        %p414 = scmp.lt.s32.totalorder %s413, 8
        %s415 = scalar_select %p414, %s413, 8
        %s416 = smul.u32 16, %s415
        %s417 = sadd.s32 %s29, 1
        %s418 = smul.u32 %s417, 2
        %s419 = smul.u32 4, %s418
        %s420 = smul.u32 8, %s29
        %v422 = vld [vmem:[%s347] sm:$0x1]
        %v423 = vld [vmem:[%s347 + $0x1] sm:$0x1]
        %v424 = vld [vmem:[%s347 + $0x2] sm:$0x1]
        %v425 = vld [vmem:[%s347 + $0x3] sm:$0x1]
        %v426 = vld [vmem:[%s347 + $0x4] sm:$0x1]
        %v427 = vld [vmem:[%s347 + $0x5] sm:$0x1]
        %v428 = vld [vmem:[%s347 + $0x6] sm:$0x1]
        %v429 = vld [vmem:[%s347 + $0x7] sm:$0x1]
        %vm430 = vcmask 253952
        %431 = vst.msk [vmem:[#allocation2] sm:$0x1] %vm430, %v422
        %432 = vst.msk [vmem:[#allocation2 + $0x1] sm:$0x1] %vm430, %v423
        %433 = vst.msk [vmem:[#allocation2 + $0x2] sm:$0x1] %vm430, %v424
        %434 = vst.msk [vmem:[#allocation2 + $0x3] sm:$0x1] %vm430, %v425
        %435 = vst.msk [vmem:[#allocation2 + $0x4] sm:$0x1] %vm430, %v426
        %436 = vst.msk [vmem:[#allocation2 + $0x5] sm:$0x1] %vm430, %v427
        %437 = vst.msk [vmem:[#allocation2 + $0x6] sm:$0x1] %vm430, %v428
        %438 = vst.msk [vmem:[#allocation2 + $0x7] sm:$0x1] %vm430, %v429
        %v439 = vld [vmem:[%s356] sm:$0x1]
        %v440 = vld [vmem:[%s356 + $0x1] sm:$0x1]
        %v441 = vld [vmem:[%s356 + $0x2] sm:$0x1]
        %v442 = vld [vmem:[%s356 + $0x3] sm:$0x1]
        %s443 = scalar_lea.vmem [#allocation2], 8
        %444 = vst.msk [vmem:[%s443] sm:$0x1] %vm430, %v439
        %445 = vst.msk [vmem:[%s443 + $0x1] sm:$0x1] %vm430, %v440
        %446 = vst.msk [vmem:[%s443 + $0x2] sm:$0x1] %vm430, %v441
        %447 = vst.msk [vmem:[%s443 + $0x3] sm:$0x1] %vm430, %v442
        %v448 = vld [vmem:[#allocation2] sm:$0x1]
        %v449 = vld [vmem:[#allocation2 + $0x1] sm:$0x1]
        %v450 = vld [vmem:[#allocation2 + $0x2] sm:$0x1]
        %v451 = vld [vmem:[#allocation2 + $0x3] sm:$0x1]
        %v452 = vld [vmem:[#allocation2 + $0x4] sm:$0x1]
        %v453 = vld [vmem:[#allocation2 + $0x5] sm:$0x1]
        %v454 = vld [vmem:[#allocation2 + $0x6] sm:$0x1]
        %v455 = vld [vmem:[#allocation2 + $0x7] sm:$0x1]
        %v456 = vld [vmem:[#allocation8] sm:$0xf]
        %v457 = vld [vmem:[#allocation8 + $0x4] sm:$0xf]
        %v458 = vld [vmem:[#allocation8 + $0x8] sm:$0xf]
        %v459 = vld [vmem:[#allocation8 + $0xc] sm:$0xf]
        %s460 = scalar_lea.vmem [#allocation2], 1
        %v461 = vld [vmem:[%s460] sm:$0x1]
        %v462 = vld [vmem:[%s460 + $0x1] sm:$0x1]
        %v463 = vld [vmem:[%s460 + $0x2] sm:$0x1]
        %v464 = vld [vmem:[%s460 + $0x3] sm:$0x1]
        %v465 = vld [vmem:[%s460 + $0x4] sm:$0x1]
        %v466 = vld [vmem:[%s460 + $0x5] sm:$0x1]
        %v467 = vld [vmem:[%s460 + $0x6] sm:$0x1]
        %v468 = vld [vmem:[%s460 + $0x7] sm:$0x1]
        %s469 = scalar_lea.vmem [#allocation8], 16
        %v470 = vld [vmem:[%s469] sm:$0xf]
        %v471 = vld [vmem:[%s469 + $0x4] sm:$0xf]
        %v472 = vld [vmem:[%s469 + $0x8] sm:$0xf]
        %v473 = vld [vmem:[%s469 + $0xc] sm:$0xf]
        %v482 = vcombine.low %v461, %v462
        %v483 = vcombine.low %v463, %v464
        %v484 = vcombine.low %v465, %v466
        %v485 = vcombine.low %v467, %v468
        %v487 = vunpack.c.l.s4 1966171168
        %v488 = vunpack.c.0.s8 %v487
        %v489 = vlaneseq
        %v490 = vshrl.u32 %v489, 7
        %v491 = vsub.s32 %v488, %v490
        %v492 = vrot.slane %v482, %v491
        %v494 = vunpack.c.l.s4 1966171168
        %v495 = vunpack.c.0.s8 %v494
        %v496 = vlaneseq
        %v497 = vshrl.u32 %v496, 7
        %v498 = vsub.s32 %v495, %v497
        %v499 = vrot.slane %v483, %v498
        %v501 = vunpack.c.l.s4 1966171168
        %v502 = vunpack.c.0.s8 %v501
        %v503 = vlaneseq
        %v504 = vshrl.u32 %v503, 7
        %v505 = vsub.s32 %v502, %v504
        %v506 = vrot.slane %v484, %v505
        %v508 = vunpack.c.l.s4 1966171168
        %v509 = vunpack.c.0.s8 %v508
        %v510 = vlaneseq
        %v511 = vshrl.u32 %v510, 7
        %v512 = vsub.s32 %v509, %v511
        %v513 = vrot.slane %v485, %v512
        %v514 = vcombine.low %v492, %v499
        %v515 = vcombine.low %v506, %v513
        %v517 = vunpack.c.l.s4 1966171168
        %v518 = vunpack.c.0.s8 %v517
        %v519 = vlaneseq
        %v520 = vshrl.u32 %v519, 7
        %v521 = vsub.s32 %v518, %v520
        %v522 = vrot.slane %v514, %v521
        %v524 = vunpack.c.l.s4 1966171168
        %v525 = vunpack.c.0.s8 %v524
        %v526 = vlaneseq
        %v527 = vshrl.u32 %v526, 7
        %v528 = vsub.s32 %v525, %v527
        %v529 = vrot.slane %v515, %v528
        %v530 = vcombine.low %v522, %v529
        %v535 = vunpack.c.l.b16 %v470
        %v536 = vunpack.c.l.b16 %v471
        %v537 = vunpack.c.l.b16 %v472
        %v538 = vunpack.c.l.b16 %v473
        %v539 = vpack.c.b16 %v536, %v535
        %v540 = vpack.c.b16 %v538, %v537
        %vm543 = vcmask 261120
        %v545 = vsel %vm543, %v530, 0
        %547 = vmatprep.subr.bf16.mxu0 0
        %548 = vmatpush1.bf16.msra.mxu0 %v539
        %549 = vmatprep.subr.bf16.mxu0 0
        %550 = vmatpush1.bf16.msra.mxu0 %v540
        %551 = vmatprep.subr.bf16.mxu0 0
        %552 = vmatpush1.bf16.msra.mxu0 0
        %553 = vmatprep.subr.bf16.mxu0 0
        %554 = vmatpush1.bf16.msra.mxu0 0
        %555 = vmatprep.subr.bf16.mxu0 0
        %556 = vmatpush1.bf16.msra.mxu0 0
        %557 = vmatprep.subr.bf16.mxu0 0
        %558 = vmatpush1.bf16.msra.mxu0 0
        %559 = vmatprep.subr.bf16.mxu0 0
        %560 = vmatpush1.bf16.msra.mxu0 0
        %561 = vmatprep.subr.bf16.mxu0 0
        %562 = vmatpush1.bf16.msra.mxu0 0
        %563 = vmatprep.subr.bf16.mxu0 0
        %564 = vmatpush1.bf16.msra.mxu0 0
        %565 = vmatprep.subr.bf16.mxu0 0
        %566 = vmatpush1.bf16.msra.mxu0 0
        %567 = vmatprep.subr.bf16.mxu0 0
        %568 = vmatpush1.bf16.msra.mxu0 0
        %569 = vmatprep.subr.bf16.mxu0 0
        %570 = vmatpush1.bf16.msra.mxu0 0
        %571 = vmatprep.subr.bf16.mxu0 0
        %572 = vmatpush1.bf16.msra.mxu0 0
        %573 = vmatprep.subr.bf16.mxu0 0
        %574 = vmatpush1.bf16.msra.mxu0 0
        %575 = vmatprep.subr.bf16.mxu0 0
        %576 = vmatpush1.bf16.msra.mxu0 0
        %577 = vmatprep.subr.bf16.mxu0 0
        %578 = vmatpush1.bf16.msra.mxu0 0
        %579 = vmatprep.mubr.bf16.mxu0 0
        %580 = vmatmul.mubr.bf16.gmra.mrb[0].mxu0 %v545
        %v581 = vpop.f32.mrb[0].mxu0
        %v582 = vadd.f32 0.0, %v581
        %v583 = vpop.f32.mrb[0].mxu0
        %v584 = vpop.f32.mrb[0].mxu0
        %v585 = vadd.f32 0.0, %v584
        %v586 = vpop.f32.mrb[0].mxu0
        %587 = vdwg.mxu0
        %v596 = vcombine.low %v448, %v449
        %v597 = vcombine.low %v450, %v451
        %v598 = vcombine.low %v452, %v453
        %v599 = vcombine.low %v454, %v455
        %v601 = vunpack.c.l.s4 1966171168
        %v602 = vunpack.c.0.s8 %v601
        %v603 = vlaneseq
        %v604 = vshrl.u32 %v603, 7
        %v605 = vsub.s32 %v602, %v604
        %v606 = vrot.slane %v596, %v605
        %v608 = vunpack.c.l.s4 1966171168
        %v609 = vunpack.c.0.s8 %v608
        %v610 = vlaneseq
        %v611 = vshrl.u32 %v610, 7
        %v612 = vsub.s32 %v609, %v611
        %v613 = vrot.slane %v597, %v612
        %v615 = vunpack.c.l.s4 1966171168
        %v616 = vunpack.c.0.s8 %v615
        %v617 = vlaneseq
        %v618 = vshrl.u32 %v617, 7
        %v619 = vsub.s32 %v616, %v618
        %v620 = vrot.slane %v598, %v619
        %v622 = vunpack.c.l.s4 1966171168
        %v623 = vunpack.c.0.s8 %v622
        %v624 = vlaneseq
        %v625 = vshrl.u32 %v624, 7
        %v626 = vsub.s32 %v623, %v625
        %v627 = vrot.slane %v599, %v626
        %v628 = vcombine.low %v606, %v613
        %v629 = vcombine.low %v620, %v627
        %v631 = vunpack.c.l.s4 1966171168
        %v632 = vunpack.c.0.s8 %v631
        %v633 = vlaneseq
        %v634 = vshrl.u32 %v633, 7
        %v635 = vsub.s32 %v632, %v634
        %v636 = vrot.slane %v628, %v635
        %v638 = vunpack.c.l.s4 1966171168
        %v639 = vunpack.c.0.s8 %v638
        %v640 = vlaneseq
        %v641 = vshrl.u32 %v640, 7
        %v642 = vsub.s32 %v639, %v641
        %v643 = vrot.slane %v629, %v642
        %v644 = vcombine.low %v636, %v643
        %v649 = vunpack.c.l.b16 %v456
        %v650 = vunpack.c.l.b16 %v457
        %v651 = vunpack.c.l.b16 %v458
        %v652 = vunpack.c.l.b16 %v459
        %v653 = vpack.c.b16 %v650, %v649
        %v654 = vpack.c.b16 %v652, %v651
        %v658 = vsel %vm543, %v644, 0
        %660 = vmatprep.subr.bf16.mxu0 0
        %661 = vmatpush1.bf16.msra.mxu0 %v653
        %662 = vmatprep.subr.bf16.mxu0 0
        %663 = vmatpush1.bf16.msra.mxu0 %v654
        %664 = vmatprep.subr.bf16.mxu0 0
        %665 = vmatpush1.bf16.msra.mxu0 0
        %666 = vmatprep.subr.bf16.mxu0 0
        %667 = vmatpush1.bf16.msra.mxu0 0
        %668 = vmatprep.subr.bf16.mxu0 0
        %669 = vmatpush1.bf16.msra.mxu0 0
        %670 = vmatprep.subr.bf16.mxu0 0
        %671 = vmatpush1.bf16.msra.mxu0 0
        %672 = vmatprep.subr.bf16.mxu0 0
        %673 = vmatpush1.bf16.msra.mxu0 0
        %674 = vmatprep.subr.bf16.mxu0 0
        %675 = vmatpush1.bf16.msra.mxu0 0
        %676 = vmatprep.subr.bf16.mxu0 0
        %677 = vmatpush1.bf16.msra.mxu0 0
        %678 = vmatprep.subr.bf16.mxu0 0
        %679 = vmatpush1.bf16.msra.mxu0 0
        %680 = vmatprep.subr.bf16.mxu0 0
        %681 = vmatpush1.bf16.msra.mxu0 0
        %682 = vmatprep.subr.bf16.mxu0 0
        %683 = vmatpush1.bf16.msra.mxu0 0
        %684 = vmatprep.subr.bf16.mxu0 0
        %685 = vmatpush1.bf16.msra.mxu0 0
        %686 = vmatprep.subr.bf16.mxu0 0
        %687 = vmatpush1.bf16.msra.mxu0 0
        %688 = vmatprep.subr.bf16.mxu0 0
        %689 = vmatpush1.bf16.msra.mxu0 0
        %690 = vmatprep.subr.bf16.mxu0 0
        %691 = vmatpush1.bf16.msra.mxu0 0
        %692 = vmatprep.mubr.bf16.mxu0 0
        %693 = vmatmul.mubr.bf16.gmra.mrb[0].mxu0 %v658
        %v694 = vpop.f32.mrb[0].mxu0
        %v695 = vadd.f32 %v582, %v694
        %v696 = vpop.f32.mrb[0].mxu0
        %v697 = vpop.f32.mrb[0].mxu0
        %v698 = vadd.f32 %v585, %v697
        %v699 = vpop.f32.mrb[0].mxu0
        %700 = vdwg.mxu0
        %v703 = vcombine.high %v695, %v695
        %v705 = vunpack.c.l.s4 1983009808
        %v706 = vunpack.c.0.s8 %v705
        %v707 = vlaneseq
        %v708 = vshrl.u32 %v707, 7
        %v709 = vsub.s32 %v706, %v708
        %v710 = vrot.slane %v695, %v709
        %v712 = vunpack.c.l.s4 1983009808
        %v713 = vunpack.c.0.s8 %v712
        %v714 = vlaneseq
        %v715 = vshrl.u32 %v714, 7
        %v716 = vsub.s32 %v713, %v715
        %v717 = vrot.slane %v703, %v716
        %v718 = vcombine.high %v710, %v710
        %v719 = vcombine.high %v717, %v717
        %v720 = vcombine.high %v698, %v698
        %v722 = vunpack.c.l.s4 1983009808
        %v723 = vunpack.c.0.s8 %v722
        %v724 = vlaneseq
        %v725 = vshrl.u32 %v724, 7
        %v726 = vsub.s32 %v723, %v725
        %v727 = vrot.slane %v698, %v726
        %v729 = vunpack.c.l.s4 1983009808
        %v730 = vunpack.c.0.s8 %v729
        %v731 = vlaneseq
        %v732 = vshrl.u32 %v731, 7
        %v733 = vsub.s32 %v730, %v732
        %v734 = vrot.slane %v720, %v733
        %v735 = vcombine.high %v727, %v727
        %v736 = vcombine.high %v734, %v734
        %s745 = scalar_lea.vmem [#allocation2], 2
        %v746 = vld [vmem:[%s745] sm:$0x1]
        %v747 = vld [vmem:[%s745 + $0x1] sm:$0x1]
        %v748 = vld [vmem:[%s745 + $0x2] sm:$0x1]
        %v749 = vld [vmem:[%s745 + $0x3] sm:$0x1]
        %v750 = vld [vmem:[%s745 + $0x4] sm:$0x1]
        %v751 = vld [vmem:[%s745 + $0x5] sm:$0x1]
        %v752 = vld [vmem:[%s745 + $0x6] sm:$0x1]
        %v753 = vld [vmem:[%s745 + $0x7] sm:$0x1]
        %s754 = scalar_lea.vmem [#allocation8], 32
        %v755 = vld [vmem:[%s754] sm:$0xf]
        %v756 = vld [vmem:[%s754 + $0x4] sm:$0xf]
        %v757 = vld [vmem:[%s754 + $0x8] sm:$0xf]
        %v758 = vld [vmem:[%s754 + $0xc] sm:$0xf]
        %v767 = vcombine.low %v746, %v747
        %v768 = vcombine.low %v748, %v749
        %v769 = vcombine.low %v750, %v751
        %v770 = vcombine.low %v752, %v753
        %v772 = vunpack.c.l.s4 1966171168
        %v773 = vunpack.c.0.s8 %v772
        %v774 = vlaneseq
        %v775 = vshrl.u32 %v774, 7
        %v776 = vsub.s32 %v773, %v775
        %v777 = vrot.slane %v767, %v776
        %v779 = vunpack.c.l.s4 1966171168
        %v780 = vunpack.c.0.s8 %v779
        %v781 = vlaneseq
        %v782 = vshrl.u32 %v781, 7
        %v783 = vsub.s32 %v780, %v782
        %v784 = vrot.slane %v768, %v783
        %v786 = vunpack.c.l.s4 1966171168
        %v787 = vunpack.c.0.s8 %v786
        %v788 = vlaneseq
        %v789 = vshrl.u32 %v788, 7
        %v790 = vsub.s32 %v787, %v789
        %v791 = vrot.slane %v769, %v790
        %v793 = vunpack.c.l.s4 1966171168
        %v794 = vunpack.c.0.s8 %v793
        %v795 = vlaneseq
        %v796 = vshrl.u32 %v795, 7
        %v797 = vsub.s32 %v794, %v796
        %v798 = vrot.slane %v770, %v797
        %v799 = vcombine.low %v777, %v784
        %v800 = vcombine.low %v791, %v798
        %v802 = vunpack.c.l.s4 1966171168
        %v803 = vunpack.c.0.s8 %v802
        %v804 = vlaneseq
        %v805 = vshrl.u32 %v804, 7
        %v806 = vsub.s32 %v803, %v805
        %v807 = vrot.slane %v799, %v806
        %v809 = vunpack.c.l.s4 1966171168
        %v810 = vunpack.c.0.s8 %v809
        %v811 = vlaneseq
        %v812 = vshrl.u32 %v811, 7
        %v813 = vsub.s32 %v810, %v812
        %v814 = vrot.slane %v800, %v813
        %v815 = vcombine.low %v807, %v814
        %v820 = vunpack.c.l.b16 %v755
        %v821 = vunpack.c.l.b16 %v756
        %v822 = vunpack.c.l.b16 %v757
        %v823 = vunpack.c.l.b16 %v758
        %v824 = vpack.c.b16 %v821, %v820
        %v825 = vpack.c.b16 %v823, %v822
        %v829 = vsel %vm543, %v815, 0
        %831 = vmatprep.subr.bf16.mxu0 0
        %832 = vmatpush1.bf16.msra.mxu0 %v824
        %833 = vmatprep.subr.bf16.mxu0 0
        %834 = vmatpush1.bf16.msra.mxu0 %v825
        %835 = vmatprep.subr.bf16.mxu0 0
        %836 = vmatpush1.bf16.msra.mxu0 0
        %837 = vmatprep.subr.bf16.mxu0 0
        %838 = vmatpush1.bf16.msra.mxu0 0
        %839 = vmatprep.subr.bf16.mxu0 0
        %840 = vmatpush1.bf16.msra.mxu0 0
        %841 = vmatprep.subr.bf16.mxu0 0
        %842 = vmatpush1.bf16.msra.mxu0 0
        %843 = vmatprep.subr.bf16.mxu0 0
        %844 = vmatpush1.bf16.msra.mxu0 0
        %845 = vmatprep.subr.bf16.mxu0 0
        %846 = vmatpush1.bf16.msra.mxu0 0
        %847 = vmatprep.subr.bf16.mxu0 0
        %848 = vmatpush1.bf16.msra.mxu0 0
        %849 = vmatprep.subr.bf16.mxu0 0
        %850 = vmatpush1.bf16.msra.mxu0 0
        %851 = vmatprep.subr.bf16.mxu0 0
        %852 = vmatpush1.bf16.msra.mxu0 0
        %853 = vmatprep.subr.bf16.mxu0 0
        %854 = vmatpush1.bf16.msra.mxu0 0
        %855 = vmatprep.subr.bf16.mxu0 0
        %856 = vmatpush1.bf16.msra.mxu0 0
        %857 = vmatprep.subr.bf16.mxu0 0
        %858 = vmatpush1.bf16.msra.mxu0 0
        %859 = vmatprep.subr.bf16.mxu0 0
        %860 = vmatpush1.bf16.msra.mxu0 0
        %861 = vmatprep.subr.bf16.mxu0 0
        %862 = vmatpush1.bf16.msra.mxu0 0
        %863 = vmatprep.mubr.bf16.mxu0 0
        %864 = vmatmul.mubr.bf16.gmra.mrb[0].mxu0 %v829
        %v865 = vpop.f32.mrb[0].mxu0
        %v866 = vadd.f32 0.0, %v865
        %v867 = vpop.f32.mrb[0].mxu0
        %v868 = vpop.f32.mrb[0].mxu0
        %v869 = vadd.f32 0.0, %v868
        %v870 = vpop.f32.mrb[0].mxu0
        %871 = vdwg.mxu0
        %v874 = vcombine.high %v866, %v866
        %v876 = vunpack.c.l.s4 1983009808
        %v877 = vunpack.c.0.s8 %v876
        %v878 = vlaneseq
        %v879 = vshrl.u32 %v878, 7
        %v880 = vsub.s32 %v877, %v879
        %v881 = vrot.slane %v866, %v880
        %v883 = vunpack.c.l.s4 1983009808
        %v884 = vunpack.c.0.s8 %v883
        %v885 = vlaneseq
        %v886 = vshrl.u32 %v885, 7
        %v887 = vsub.s32 %v884, %v886
        %v888 = vrot.slane %v874, %v887
        %v889 = vcombine.high %v881, %v881
        %v890 = vcombine.high %v888, %v888
        %v891 = vcombine.high %v869, %v869
        %v893 = vunpack.c.l.s4 1983009808
        %v894 = vunpack.c.0.s8 %v893
        %v895 = vlaneseq
        %v896 = vshrl.u32 %v895, 7
        %v897 = vsub.s32 %v894, %v896
        %v898 = vrot.slane %v869, %v897
        %v900 = vunpack.c.l.s4 1983009808
        %v901 = vunpack.c.0.s8 %v900
        %v902 = vlaneseq
        %v903 = vshrl.u32 %v902, 7
        %v904 = vsub.s32 %v901, %v903
        %v905 = vrot.slane %v891, %v904
        %v906 = vcombine.high %v898, %v898
        %v907 = vcombine.high %v905, %v905
        %v916 = vadd.f32 %v710, %v881
        %v917 = vadd.f32 %v718, %v889
        %v918 = vadd.f32 %v717, %v888
        %v919 = vadd.f32 %v719, %v890
        %v920 = vadd.f32 %v727, %v898
        %v921 = vadd.f32 %v735, %v906
        %v922 = vadd.f32 %v734, %v905
        %v923 = vadd.f32 %v736, %v907
        %s924 = scalar_lea.vmem [#allocation2], 3
        %v925 = vld [vmem:[%s924] sm:$0x1]
        %v926 = vld [vmem:[%s924 + $0x1] sm:$0x1]
        %v927 = vld [vmem:[%s924 + $0x2] sm:$0x1]
        %v928 = vld [vmem:[%s924 + $0x3] sm:$0x1]
        %v929 = vld [vmem:[%s924 + $0x4] sm:$0x1]
        %v930 = vld [vmem:[%s924 + $0x5] sm:$0x1]
        %v931 = vld [vmem:[%s924 + $0x6] sm:$0x1]
        %v932 = vld [vmem:[%s924 + $0x7] sm:$0x1]
        %s933 = scalar_lea.vmem [#allocation8], 48
        %v934 = vld [vmem:[%s933] sm:$0xf]
        %v935 = vld [vmem:[%s933 + $0x4] sm:$0xf]
        %v936 = vld [vmem:[%s933 + $0x8] sm:$0xf]
        %v937 = vld [vmem:[%s933 + $0xc] sm:$0xf]
        %v946 = vcombine.low %v925, %v926
        %v947 = vcombine.low %v927, %v928
        %v948 = vcombine.low %v929, %v930
        %v949 = vcombine.low %v931, %v932
        %v951 = vunpack.c.l.s4 1966171168
        %v952 = vunpack.c.0.s8 %v951
        %v953 = vlaneseq
        %v954 = vshrl.u32 %v953, 7
        %v955 = vsub.s32 %v952, %v954
        %v956 = vrot.slane %v946, %v955
        %v958 = vunpack.c.l.s4 1966171168
        %v959 = vunpack.c.0.s8 %v958
        %v960 = vlaneseq
        %v961 = vshrl.u32 %v960, 7
        %v962 = vsub.s32 %v959, %v961
        %v963 = vrot.slane %v947, %v962
        %v965 = vunpack.c.l.s4 1966171168
        %v966 = vunpack.c.0.s8 %v965
        %v967 = vlaneseq
        %v968 = vshrl.u32 %v967, 7
        %v969 = vsub.s32 %v966, %v968
        %v970 = vrot.slane %v948, %v969
        %v972 = vunpack.c.l.s4 1966171168
        %v973 = vunpack.c.0.s8 %v972
        %v974 = vlaneseq
        %v975 = vshrl.u32 %v974, 7
        %v976 = vsub.s32 %v973, %v975
        %v977 = vrot.slane %v949, %v976
        %v978 = vcombine.low %v956, %v963
        %v979 = vcombine.low %v970, %v977
        %v981 = vunpack.c.l.s4 1966171168
        %v982 = vunpack.c.0.s8 %v981
        %v983 = vlaneseq
        %v984 = vshrl.u32 %v983, 7
        %v985 = vsub.s32 %v982, %v984
        %v986 = vrot.slane %v978, %v985
        %v988 = vunpack.c.l.s4 1966171168
        %v989 = vunpack.c.0.s8 %v988
        %v990 = vlaneseq
        %v991 = vshrl.u32 %v990, 7
        %v992 = vsub.s32 %v989, %v991
        %v993 = vrot.slane %v979, %v992
        %v994 = vcombine.low %v986, %v993
        %v999 = vunpack.c.l.b16 %v934
        %v1000 = vunpack.c.l.b16 %v935
        %v1001 = vunpack.c.l.b16 %v936
        %v1002 = vunpack.c.l.b16 %v937
        %v1003 = vpack.c.b16 %v1000, %v999
        %v1004 = vpack.c.b16 %v1002, %v1001
        %v1008 = vsel %vm543, %v994, 0
        %1010 = vmatprep.subr.bf16.mxu0 0
        %1011 = vmatpush1.bf16.msra.mxu0 %v1003
        %1012 = vmatprep.subr.bf16.mxu0 0
        %1013 = vmatpush1.bf16.msra.mxu0 %v1004
        %1014 = vmatprep.subr.bf16.mxu0 0
        %1015 = vmatpush1.bf16.msra.mxu0 0
        %1016 = vmatprep.subr.bf16.mxu0 0
        %1017 = vmatpush1.bf16.msra.mxu0 0
        %1018 = vmatprep.subr.bf16.mxu0 0
        %1019 = vmatpush1.bf16.msra.mxu0 0
        %1020 = vmatprep.subr.bf16.mxu0 0
        %1021 = vmatpush1.bf16.msra.mxu0 0
        %1022 = vmatprep.subr.bf16.mxu0 0
        %1023 = vmatpush1.bf16.msra.mxu0 0
        %1024 = vmatprep.subr.bf16.mxu0 0
        %1025 = vmatpush1.bf16.msra.mxu0 0
        %1026 = vmatprep.subr.bf16.mxu0 0
        %1027 = vmatpush1.bf16.msra.mxu0 0
        %1028 = vmatprep.subr.bf16.mxu0 0
        %1029 = vmatpush1.bf16.msra.mxu0 0
        %1030 = vmatprep.subr.bf16.mxu0 0
        %1031 = vmatpush1.bf16.msra.mxu0 0
        %1032 = vmatprep.subr.bf16.mxu0 0
        %1033 = vmatpush1.bf16.msra.mxu0 0
        %1034 = vmatprep.subr.bf16.mxu0 0
        %1035 = vmatpush1.bf16.msra.mxu0 0
        %1036 = vmatprep.subr.bf16.mxu0 0
        %1037 = vmatpush1.bf16.msra.mxu0 0
        %1038 = vmatprep.subr.bf16.mxu0 0
        %1039 = vmatpush1.bf16.msra.mxu0 0
        %1040 = vmatprep.subr.bf16.mxu0 0
        %1041 = vmatpush1.bf16.msra.mxu0 0
        %1042 = vmatprep.mubr.bf16.mxu0 0
        %1043 = vmatmul.mubr.bf16.gmra.mrb[0].mxu0 %v1008
        %v1044 = vpop.f32.mrb[0].mxu0
        %v1045 = vadd.f32 0.0, %v1044
        %v1046 = vpop.f32.mrb[0].mxu0
        %v1047 = vpop.f32.mrb[0].mxu0
        %v1048 = vadd.f32 0.0, %v1047
        %v1049 = vpop.f32.mrb[0].mxu0
        %1050 = vdwg.mxu0
        %v1053 = vcombine.high %v1045, %v1045
        %v1055 = vunpack.c.l.s4 1983009808
        %v1056 = vunpack.c.0.s8 %v1055
        %v1057 = vlaneseq
        %v1058 = vshrl.u32 %v1057, 7
        %v1059 = vsub.s32 %v1056, %v1058
        %v1060 = vrot.slane %v1045, %v1059
        %v1062 = vunpack.c.l.s4 1983009808
        %v1063 = vunpack.c.0.s8 %v1062
        %v1064 = vlaneseq
        %v1065 = vshrl.u32 %v1064, 7
        %v1066 = vsub.s32 %v1063, %v1065
        %v1067 = vrot.slane %v1053, %v1066
        %v1068 = vcombine.high %v1060, %v1060
        %v1069 = vcombine.high %v1067, %v1067
        %v1070 = vcombine.high %v1048, %v1048
        %v1072 = vunpack.c.l.s4 1983009808
        %v1073 = vunpack.c.0.s8 %v1072
        %v1074 = vlaneseq
        %v1075 = vshrl.u32 %v1074, 7
        %v1076 = vsub.s32 %v1073, %v1075
        %v1077 = vrot.slane %v1048, %v1076
        %v1079 = vunpack.c.l.s4 1983009808
        %v1080 = vunpack.c.0.s8 %v1079
        %v1081 = vlaneseq
        %v1082 = vshrl.u32 %v1081, 7
        %v1083 = vsub.s32 %v1080, %v1082
        %v1084 = vrot.slane %v1070, %v1083
        %v1085 = vcombine.high %v1077, %v1077
        %v1086 = vcombine.high %v1084, %v1084
        %v1095 = vadd.f32 %v916, %v1060
        %v1096 = vadd.f32 %v917, %v1068
        %v1097 = vadd.f32 %v918, %v1067
        %v1098 = vadd.f32 %v919, %v1069
        %v1099 = vadd.f32 %v920, %v1077
        %v1100 = vadd.f32 %v921, %v1085
        %v1101 = vadd.f32 %v922, %v1084
        %v1102 = vadd.f32 %v923, %v1086
        %s1103 = scalar_lea.vmem [#allocation2], 4
        %v1104 = vld [vmem:[%s1103] sm:$0x1]
        %v1105 = vld [vmem:[%s1103 + $0x1] sm:$0x1]
        %v1106 = vld [vmem:[%s1103 + $0x2] sm:$0x1]
        %v1107 = vld [vmem:[%s1103 + $0x3] sm:$0x1]
        %v1108 = vld [vmem:[%s1103 + $0x4] sm:$0x1]
        %v1109 = vld [vmem:[%s1103 + $0x5] sm:$0x1]
        %v1110 = vld [vmem:[%s1103 + $0x6] sm:$0x1]
        %v1111 = vld [vmem:[%s1103 + $0x7] sm:$0x1]
        %s1112 = scalar_lea.vmem [#allocation8], 64
        %v1113 = vld [vmem:[%s1112] sm:$0xf]
        %v1114 = vld [vmem:[%s1112 + $0x4] sm:$0xf]
        %v1115 = vld [vmem:[%s1112 + $0x8] sm:$0xf]
        %v1116 = vld [vmem:[%s1112 + $0xc] sm:$0xf]
        %v1125 = vcombine.low %v1104, %v1105
        %v1126 = vcombine.low %v1106, %v1107
        %v1127 = vcombine.low %v1108, %v1109
        %v1128 = vcombine.low %v1110, %v1111
        %v1130 = vunpack.c.l.s4 1966171168
        %v1131 = vunpack.c.0.s8 %v1130
        %v1132 = vlaneseq
        %v1133 = vshrl.u32 %v1132, 7
        %v1134 = vsub.s32 %v1131, %v1133
        %v1135 = vrot.slane %v1125, %v1134
        %v1137 = vunpack.c.l.s4 1966171168
        %v1138 = vunpack.c.0.s8 %v1137
        %v1139 = vlaneseq
        %v1140 = vshrl.u32 %v1139, 7
        %v1141 = vsub.s32 %v1138, %v1140
        %v1142 = vrot.slane %v1126, %v1141
        %v1144 = vunpack.c.l.s4 1966171168
        %v1145 = vunpack.c.0.s8 %v1144
        %v1146 = vlaneseq
        %v1147 = vshrl.u32 %v1146, 7
        %v1148 = vsub.s32 %v1145, %v1147
        %v1149 = vrot.slane %v1127, %v1148
        %v1151 = vunpack.c.l.s4 1966171168
        %v1152 = vunpack.c.0.s8 %v1151
        %v1153 = vlaneseq
        %v1154 = vshrl.u32 %v1153, 7
        %v1155 = vsub.s32 %v1152, %v1154
        %v1156 = vrot.slane %v1128, %v1155
        %v1157 = vcombine.low %v1135, %v1142
        %v1158 = vcombine.low %v1149, %v1156
        %v1160 = vunpack.c.l.s4 1966171168
        %v1161 = vunpack.c.0.s8 %v1160
        %v1162 = vlaneseq
        %v1163 = vshrl.u32 %v1162, 7
        %v1164 = vsub.s32 %v1161, %v1163
        %v1165 = vrot.slane %v1157, %v1164
        %v1167 = vunpack.c.l.s4 1966171168
        %v1168 = vunpack.c.0.s8 %v1167
        %v1169 = vlaneseq
        %v1170 = vshrl.u32 %v1169, 7
        %v1171 = vsub.s32 %v1168, %v1170
        %v1172 = vrot.slane %v1158, %v1171
        %v1173 = vcombine.low %v1165, %v1172
        %v1178 = vunpack.c.l.b16 %v1113
        %v1179 = vunpack.c.l.b16 %v1114
        %v1180 = vunpack.c.l.b16 %v1115
        %v1181 = vunpack.c.l.b16 %v1116
        %v1182 = vpack.c.b16 %v1179, %v1178
        %v1183 = vpack.c.b16 %v1181, %v1180
        %v1187 = vsel %vm543, %v1173, 0
        %1189 = vmatprep.subr.bf16.mxu0 0
        %1190 = vmatpush1.bf16.msra.mxu0 %v1182
        %1191 = vmatprep.subr.bf16.mxu0 0
        %1192 = vmatpush1.bf16.msra.mxu0 %v1183
        %1193 = vmatprep.subr.bf16.mxu0 0
        %1194 = vmatpush1.bf16.msra.mxu0 0
        %1195 = vmatprep.subr.bf16.mxu0 0
        %1196 = vmatpush1.bf16.msra.mxu0 0
        %1197 = vmatprep.subr.bf16.mxu0 0
        %1198 = vmatpush1.bf16.msra.mxu0 0
        %1199 = vmatprep.subr.bf16.mxu0 0
        %1200 = vmatpush1.bf16.msra.mxu0 0
        %1201 = vmatprep.subr.bf16.mxu0 0
        %1202 = vmatpush1.bf16.msra.mxu0 0
        %1203 = vmatprep.subr.bf16.mxu0 0
        %1204 = vmatpush1.bf16.msra.mxu0 0
        %1205 = vmatprep.subr.bf16.mxu0 0
        %1206 = vmatpush1.bf16.msra.mxu0 0
        %1207 = vmatprep.subr.bf16.mxu0 0
        %1208 = vmatpush1.bf16.msra.mxu0 0
        %1209 = vmatprep.subr.bf16.mxu0 0
        %1210 = vmatpush1.bf16.msra.mxu0 0
        %1211 = vmatprep.subr.bf16.mxu0 0
        %1212 = vmatpush1.bf16.msra.mxu0 0
        %1213 = vmatprep.subr.bf16.mxu0 0
        %1214 = vmatpush1.bf16.msra.mxu0 0
        %1215 = vmatprep.subr.bf16.mxu0 0
        %1216 = vmatpush1.bf16.msra.mxu0 0
        %1217 = vmatprep.subr.bf16.mxu0 0
        %1218 = vmatpush1.bf16.msra.mxu0 0
        %1219 = vmatprep.subr.bf16.mxu0 0
        %1220 = vmatpush1.bf16.msra.mxu0 0
        %1221 = vmatprep.mubr.bf16.mxu0 0
        %1222 = vmatmul.mubr.bf16.gmra.mrb[0].mxu0 %v1187
        %v1223 = vpop.f32.mrb[0].mxu0
        %v1224 = vadd.f32 0.0, %v1223
        %v1225 = vpop.f32.mrb[0].mxu0
        %v1226 = vpop.f32.mrb[0].mxu0
        %v1227 = vadd.f32 0.0, %v1226
        %v1228 = vpop.f32.mrb[0].mxu0
        %1229 = vdwg.mxu0
        %v1232 = vcombine.high %v1224, %v1224
        %v1234 = vunpack.c.l.s4 1983009808
        %v1235 = vunpack.c.0.s8 %v1234
        %v1236 = vlaneseq
        %v1237 = vshrl.u32 %v1236, 7
        %v1238 = vsub.s32 %v1235, %v1237
        %v1239 = vrot.slane %v1224, %v1238
        %v1241 = vunpack.c.l.s4 1983009808
        %v1242 = vunpack.c.0.s8 %v1241
        %v1243 = vlaneseq
        %v1244 = vshrl.u32 %v1243, 7
        %v1245 = vsub.s32 %v1242, %v1244
        %v1246 = vrot.slane %v1232, %v1245
        %v1247 = vcombine.high %v1239, %v1239
        %v1248 = vcombine.high %v1246, %v1246
        %v1249 = vcombine.high %v1227, %v1227
        %v1251 = vunpack.c.l.s4 1983009808
        %v1252 = vunpack.c.0.s8 %v1251
        %v1253 = vlaneseq
        %v1254 = vshrl.u32 %v1253, 7
        %v1255 = vsub.s32 %v1252, %v1254
        %v1256 = vrot.slane %v1227, %v1255
        %v1258 = vunpack.c.l.s4 1983009808
        %v1259 = vunpack.c.0.s8 %v1258
        %v1260 = vlaneseq
        %v1261 = vshrl.u32 %v1260, 7
        %v1262 = vsub.s32 %v1259, %v1261
        %v1263 = vrot.slane %v1249, %v1262
        %v1264 = vcombine.high %v1256, %v1256
        %v1265 = vcombine.high %v1263, %v1263
        %v1274 = vadd.f32 %v1095, %v1239
        %v1275 = vadd.f32 %v1096, %v1247
        %v1276 = vadd.f32 %v1097, %v1246
        %v1277 = vadd.f32 %v1098, %v1248
        %v1278 = vadd.f32 %v1099, %v1256
        %v1279 = vadd.f32 %v1100, %v1264
        %v1280 = vadd.f32 %v1101, %v1263
        %v1281 = vadd.f32 %v1102, %v1265
        %v1282 = vld [vmem:[#allocation9] sm:$0x1]
        %v1284 = vlaneseq
        %v1285 = vshrl.u32 %v1284, 7
        %v1286 = vsub.s32 0, %v1285
        %v1287 = vrot.slane %v1282, %v1286
        %v1289 = vmul.f32 %v1274, %v1287
        %v1290 = vmul.f32 %v1275, %v1287
        %v1291 = vmul.f32 %v1276, %v1287
        %v1292 = vmul.f32 %v1277, %v1287
        %v1293 = vmul.f32 %v1278, %v1287
        %v1294 = vmul.f32 %v1279, %v1287
        %v1295 = vmul.f32 %v1280, %v1287
        %v1296 = vmul.f32 %v1281, %v1287
        %v1297 = vld [vmem:[#allocation11] sm:$0x1]
        %v1299 = vlaneseq
        %v1300 = vshrl.u32 %v1299, 7
        %v1301 = vsub.s32 0, %v1300
        %v1302 = vrot.slane %v1297, %v1301
        %v1304 = vadd.f32 %v1289, %v1302
        %v1305 = vadd.f32 %v1290, %v1302
        %v1306 = vadd.f32 %v1291, %v1302
        %v1307 = vadd.f32 %v1292, %v1302
        %v1308 = vadd.f32 %v1293, %v1302
        %v1309 = vadd.f32 %v1294, %v1302
        %v1310 = vadd.f32 %v1295, %v1302
        %v1311 = vadd.f32 %v1296, %v1302
        %v1312 = vmax.f32 %v1304, 0.0
        %v1313 = vmax.f32 %v1305, 0.0
        %v1314 = vmax.f32 %v1306, 0.0
        %v1315 = vmax.f32 %v1307, 0.0
        %v1316 = vmax.f32 %v1308, 0.0
        %v1317 = vmax.f32 %v1309, 0.0
        %v1318 = vmax.f32 %v1310, 0.0
        %v1319 = vmax.f32 %v1311, 0.0
        %v1320 = vld [vmem:[#allocation12] sm:$0x1]
        %v1322 = vlaneseq
        %v1323 = vshrl.u32 %v1322, 7
        %v1324 = vsub.s32 0, %v1323
        %v1325 = vrot.slane %v1320, %v1324
        %v1327 = vmul.f32 %v1312, %v1325
        %v1328 = vmul.f32 %v1313, %v1325
        %v1329 = vmul.f32 %v1314, %v1325
        %v1330 = vmul.f32 %v1315, %v1325
        %v1331 = vmul.f32 %v1316, %v1325
        %v1332 = vmul.f32 %v1317, %v1325
        %v1333 = vmul.f32 %v1318, %v1325
        %v1334 = vmul.f32 %v1319, %v1325
        %v1335 = vld [vmem:[#allocation14] sm:$0x1]
        %v1337 = vlaneseq
        %v1338 = vshrl.u32 %v1337, 7
        %v1339 = vsub.s32 0, %v1338
        %v1340 = vrot.slane %v1335, %v1339
        %v1342 = vadd.f32 %v1327, %v1340
        %v1343 = vadd.f32 %v1328, %v1340
        %v1344 = vadd.f32 %v1329, %v1340
        %v1345 = vadd.f32 %v1330, %v1340
        %v1346 = vadd.f32 %v1331, %v1340
        %v1347 = vadd.f32 %v1332, %v1340
        %v1348 = vadd.f32 %v1333, %v1340
        %v1349 = vadd.f32 %v1334, %v1340
        %v1350 = vmax.f32 %v1342, 0.0
        %v1351 = vmax.f32 %v1343, 0.0
        %v1352 = vmax.f32 %v1344, 0.0
        %v1353 = vmax.f32 %v1345, 0.0
        %v1354 = vmax.f32 %v1346, 0.0
        %v1355 = vmax.f32 %v1347, 0.0
        %v1356 = vmax.f32 %v1348, 0.0
        %v1357 = vmax.f32 %v1349, 0.0
        %vm1358 = vcmask 254976
        %1359 = vst.msk [vmem:[%s411] sm:$0x3] %vm1358, %v1350
        %1360 = vst.msk [vmem:[%s411 + $0x2] sm:$0x3] %vm1358, %v1351
        %1361 = vst.msk [vmem:[%s411 + $0x4] sm:$0x3] %vm1358, %v1352
        %1362 = vst.msk [vmem:[%s411 + $0x6] sm:$0x3] %vm1358, %v1353
        %1363 = vst.msk [vmem:[%s411 + $0x8] sm:$0x3] %vm1358, %v1354
        %1364 = vst.msk [vmem:[%s411 + $0xa] sm:$0x3] %vm1358, %v1355
        %1365 = vst.msk [vmem:[%s411 + $0xc] sm:$0x3] %vm1358, %v1356
        %1366 = vst.msk [vmem:[%s411 + $0xe] sm:$0x3] %vm1358, %v1357
        %s1367 = sand.u32 %s198, 1
        %s1368 = scalar_lea.sflag [#allocation5], %s1367
        %s1369 = sand.u32 %s198, 1
        %s1370 = smul.addr %s1369, 16
        %s1371 = scalar_lea.vmem [#allocation15], %s1370
        // Predicated region
        $region77: #{tpu_custom_call.1} parent=47 // pred_check
          %p1372 = pneg %p208
        $region78: #{tpu_custom_call.1} parent=47 // pred_check_branch
          %1374 = sbr.rel (%p1372) target = $region80
        $region79: #{tpu_custom_call.1} parent=47 // pred_region
          %s1375 = smul.u32 8, %s29
          %s1377 = ssub.s32 256, 256
          %1378 = vsyncadd %s1368, %s1377
          %s1379 = smul.addr %s1375, 32
          %s1380 = scalar_lea.hbm %s7, %s1379
          %s1381 = sshll.u32 %s1371, 4
          %s1382 = int_to_ptr.vmem [resolvable:$true] %s1381
          %1387 = dma.vmem_to_hbm [thread:$0]  %s1382, 256, %s1380, %s1368, 32, 32, 2
        $region80: #{tpu_custom_call.1} parent=47 // pred_fallthru
          _
      $region48: #{tpu_custom_call.1} parent=5 // pred_fallthru
        _
      %p1388 = scmp.le.s32.totalorder 2, %s24
      // Predicated region
      $region81: #{tpu_custom_call.1} parent=5 // pred_check
        %p1389 = pneg %p1388
      $region82: #{tpu_custom_call.1} parent=5 // pred_check_branch
        %1391 = sbr.rel (%p1389) target = $region84
      $region83: #{tpu_custom_call.1} parent=5 // pred_region
        %s1392 = ssub.s32 %s24, 2
        // Predicated region
        $region85: #{tpu_custom_call.1} parent=83 // pred_check
          %p1393 = pneg %p214
        $region86: #{tpu_custom_call.1} parent=83 // pred_check_branch
          %1395 = sbr.rel (%p1393) target = $region88
        $region87: #{tpu_custom_call.1} parent=83 // pred_region
          %s1396 = sand.u32 %s199, 1
          %s1397 = scalar_lea.sflag [#allocation5], %s1396
          %s1398 = sand.u32 %s199, 1
          %s1399 = smul.addr %s1398, 16
          %s1400 = scalar_lea.vmem [#allocation15], %s1399
          %1401 = dma.done %s1397, 256
        $region88: #{tpu_custom_call.1} parent=83 // pred_fallthru
          _
      $region84: #{tpu_custom_call.1} parent=5 // pred_fallthru
        _
    $region6: #{tpu_custom_call.1} parent=1 // loop_footer
      %s28 = sadd.s32 1, %s24
    $region7: #{tpu_custom_call.1} parent=1 // loop_footer_branch
      %23 = sbr.rel target = $region3
    $region8: #{tpu_custom_call.1} parent=1 // loop_exit
      _
    %1402 = vsyncpa [#allocation4], 1
    %s1403 = scalar_lea.sflag [#allocation4], 1
    %1404 = vsyncpa %s1403, 1
    %1405 = vsyncpa [#allocation7], 1
    %s1406 = scalar_lea.sflag [#allocation7], 1
    %1407 = vsyncpa %s1406, 1
    %1408 = vsyncpa [#allocation10], 1
    %1409 = vsyncpa [#allocation13], 1
    %1410 = vsyncpa [#allocation5], 1
    %s1411 = scalar_lea.sflag [#allocation5], 1
    %1412 = vsyncpa %s1411, 1

</llo_original>
